<compile_context>
chip_gen: v7x
topology: tpu7x:2x2x1
jax: 0.10.0
libtpu: 0.0.40
codegen_flags: <defaults>
</compile_context>

<pallas_src>
import jax
import jax.numpy as jnp
from jax.experimental import pallas as pl
from jax.experimental.pallas import tpu as pltpu

INPUT_SIZE = 776
EPS = 1e-5              # PyTorch BatchNorm1d default eps
DEFAULT_TILE_B = 1024   # review: 1024-2048; >=2 grid steps appear once B > tile


def _round_up(n, m):
    return ((n + m - 1) // m) * m


# --------------------------------------------------------------------------
# Kernel
# --------------------------------------------------------------------------
def chessnet_kernel(x_ref,
                    w1_ref, b1_ref,
                    w2_ref, b2_ref,
                    w3_ref, b3_ref,
                    w4_ref, b4_ref,
                    o_ref):
    """Fused MLP forward: 3x (Linear[BN folded] + ReLU) + Linear + Sigmoid."""
    h = x_ref[...]
    if h.dtype != jnp.bfloat16:       # producer should already deliver bf16
        h = h.astype(jnp.bfloat16)

    h = jnp.dot(h, w1_ref[...], preferred_element_type=jnp.float32) + b1_ref[...]
    h = jnp.maximum(h, 0.0).astype(jnp.bfloat16)

    h = jnp.dot(h, w2_ref[...], preferred_element_type=jnp.float32) + b2_ref[...]
    h = jnp.maximum(h, 0.0).astype(jnp.bfloat16)

    h = jnp.dot(h, w3_ref[...], preferred_element_type=jnp.float32) + b3_ref[...]
    h = jnp.maximum(h, 0.0)

    # Final Linear(128 -> 1): VPU multiply + XLU lane reduction instead of an
    # N=1 MXU matmul (avoids a full MXU fill/drain on the critical path).
    logits = jnp.sum(h * w4_ref[...], axis=-1, keepdims=True) + b4_ref[...]

    # Sigmoid: exp on the EUP, exact reciprocal keeps outputs strictly in [0, 1].
    o_ref[...] = pl.reciprocal(1.0 + jnp.exp(-logits))


# --------------------------------------------------------------------------
# Parameters
# --------------------------------------------------------------------------
def init_raw_params(key, input_size=INPUT_SIZE):
    """PyTorch-equivalent raw params (Linear default init + BN running stats)."""
    dims = [input_size, 512, 256, 128, 1]
    raw = []
    for i in range(4):
        fan_in, fan_out = dims[i], dims[i + 1]
        key, kw, kb, ks = jax.random.split(key, 4)
        bound = 1.0 / jnp.sqrt(jnp.float32(fan_in))
        layer = {
            "w": jax.random.uniform(kw, (fan_in, fan_out), jnp.float32, -bound, bound),
            "b": jax.random.uniform(kb, (fan_out,), jnp.float32, -bound, bound),
        }
        if i < 3:
            kg, kbe, km, kv = jax.random.split(ks, 4)
            layer.update(
                gamma=jax.random.uniform(kg, (fan_out,), jnp.float32, 0.8, 1.2),
                beta=0.1 * jax.random.normal(kbe, (fan_out,), jnp.float32),
                mean=0.1 * jax.random.normal(km, (fan_out,), jnp.float32),
                var=jax.random.uniform(kv, (fan_out,), jnp.float32, 0.5, 1.5),
            )
        raw.append(layer)
    return raw


def prepare_params(raw):
    """One-time transform: fold BN into Linear, cast matmul weights to bf16."""
    params = []
    for i, layer in enumerate(raw):
        w, b = layer["w"], layer["b"]
        if i < 3:
            scale = layer["gamma"] * jax.lax.rsqrt(layer["var"] + EPS)   # [out]
            w = w * scale[None, :]
            b = (b - layer["mean"]) * scale + layer["beta"]
            params += [w.astype(jnp.bfloat16),
                       b.reshape(1, -1).astype(jnp.float32)]
        else:
            # Final layer: store weight as a [1, 128] f32 row for the reduction.
            params += [w.reshape(1, -1).astype(jnp.float32),
                       b.reshape(1, 1).astype(jnp.float32)]
    return params


# --------------------------------------------------------------------------
# Wrapper
# --------------------------------------------------------------------------
def chessnet_forward(x, params, max_tile_b=DEFAULT_TILE_B):
    """x: [B, 776] (bf16 preferred, 0/1 planes exact) -> [B, 1] f32 in [0, 1]."""
    B, F = x.shape
    assert F == params[0].shape[0], (F, params[0].shape)

    # Batch tiling: choose the tile so the residual pad is at most a few rows
    # (never a whole tile), and keep it sublane-aligned (multiple of 8).
    num_tiles = pl.cdiv(B, max_tile_b)
    tile_b = _round_up(pl.cdiv(B, num_tiles), 8)
    b_pad = _round_up(B, tile_b)
    if b_pad != B:
        x = jnp.pad(x, ((0, b_pad - B), (0, 0)))
    grid = (b_pad // tile_b,)

    # x: native 776 columns (block last-dim == full array dim -> legal).
    x_spec = pl.BlockSpec((tile_b, F), lambda i: (i, 0))
    # Weights/biases: full-array blocks, constant index_map -> DMA'd once and
    # kept VMEM-resident across all batch tiles (~0.9 MiB total).
    weight_specs = [pl.BlockSpec(p.shape, lambda i: (0, 0)) for p in params]
    out_spec = pl.BlockSpec((tile_b, 1), lambda i: (i, 0))

    out = pl.pallas_call(
        chessnet_kernel,
        out_shape=jax.ShapeDtypeStruct((b_pad, 1), jnp.float32),
        grid=grid,
        in_specs=[x_spec] + weight_specs,
        out_specs=out_spec,
        compiler_params=pltpu.CompilerParams(
            dimension_semantics=("parallel",),       # shard batch tiles (2 TCs on v7x)
            vmem_limit_bytes=48 * 1024 * 1024,       # safe under v7x's 64 MiB physical
        ),
    )(x, *params)
    return out[:B]


# --------------------------------------------------------------------------
# Pure-JAX reference (eval-mode semantics, un-folded f32 params)
# --------------------------------------------------------------------------
def reference_forward(x, raw):
    h = x
    for i, layer in enumerate(raw):
        h = h @ layer["w"] + layer["b"]
        if i < 3:
            h = (h - layer["mean"]) * jax.lax.rsqrt(layer["var"] + EPS)
            h = h * layer["gamma"] + layer["beta"]
            h = jnp.maximum(h, 0.0)
    return jax.nn.sigmoid(h)


if __name__ == "__main__":
    key = jax.random.PRNGKey(0)
    key, k_x, k_p = jax.random.split(key, 3)

    batch = 8
    # Chess feature planes are 0/1 -> exactly representable in bf16.
    x_f32 = jax.random.bernoulli(k_x, 0.3, (batch, INPUT_SIZE)).astype(jnp.float32)
    x_bf16 = x_f32.astype(jnp.bfloat16)   # "producer" emits bf16; cast is exact

    raw = init_raw_params(k_p, input_size=INPUT_SIZE)
    params = prepare_params(raw)

    out = chessnet_forward(x_bf16, params)
    out = jax.block_until_ready(out)

    ref = reference_forward(x_f32, raw)

    assert out.shape == (batch, 1), out.shape
    assert bool(jnp.all((out >= 0.0) & (out <= 1.0)))
    max_err = float(jnp.max(jnp.abs(out - ref)))
    assert max_err < 5e-2, f"max abs error vs reference: {max_err}"
    print("KERNEL_OK")
</pallas_src>

<mosaic_0001>
module attributes {stable_mosaic.version = 11 : i64} {
  func.func @chessnet_kernel(%arg0: i32, %arg1: memref<8x776xbf16, #tpu.memory_space<vmem>>, %arg2: memref<776x512xbf16, #tpu.memory_space<vmem>>, %arg3: memref<1x512xf32, #tpu.memory_space<vmem>>, %arg4: memref<512x256xbf16, #tpu.memory_space<vmem>>, %arg5: memref<1x256xf32, #tpu.memory_space<vmem>>, %arg6: memref<256x128xbf16, #tpu.memory_space<vmem>>, %arg7: memref<1x128xf32, #tpu.memory_space<vmem>>, %arg8: memref<1x128xf32, #tpu.memory_space<vmem>>, %arg9: memref<1x1xf32, #tpu.memory_space<vmem>>, %arg10: memref<8x1xf32, #tpu.memory_space<vmem>>) attributes {dimension_semantics = [#tpu.dimension_semantics<parallel>], iteration_bounds = array<i64: 1>, scalar_prefetch = 0 : i64, scratch_operands = 0 : i64, tpu.core_type = #tpu.core_type<tc>, window_params = [{transform_indices = @transform_0, window_bounds = array<i64: 8, 776>}, {pipeline_mode = #tpu.pipeline_mode<synchronous>, transform_indices = @transform_1, window_bounds = array<i64: 776, 512>}, {pipeline_mode = #tpu.pipeline_mode<synchronous>, transform_indices = @transform_2, window_bounds = array<i64: 1, 512>}, {pipeline_mode = #tpu.pipeline_mode<synchronous>, transform_indices = @transform_3, window_bounds = array<i64: 512, 256>}, {pipeline_mode = #tpu.pipeline_mode<synchronous>, transform_indices = @transform_4, window_bounds = array<i64: 1, 256>}, {pipeline_mode = #tpu.pipeline_mode<synchronous>, transform_indices = @transform_5, window_bounds = array<i64: 256, 128>}, {pipeline_mode = #tpu.pipeline_mode<synchronous>, transform_indices = @transform_6, window_bounds = array<i64: 1, 128>}, {pipeline_mode = #tpu.pipeline_mode<synchronous>, transform_indices = @transform_7, window_bounds = array<i64: 1, 128>}, {pipeline_mode = #tpu.pipeline_mode<synchronous>, transform_indices = @transform_8, window_bounds = array<i64: 1, 1>}, {transform_indices = @transform_9, window_bounds = array<i64: 8, 1>}]} {
    %c0 = arith.constant 0 : index
    %c0_0 = arith.constant 0 : index
    %0 = vector.load %arg1[%c0, %c0_0] : memref<8x776xbf16, #tpu.memory_space<vmem>>, vector<8x776xbf16>
    %c0_1 = arith.constant 0 : index
    %c0_2 = arith.constant 0 : index
    %1 = vector.load %arg2[%c0_1, %c0_2] : memref<776x512xbf16, #tpu.memory_space<vmem>>, vector<776x512xbf16>
    %cst = arith.constant dense<0.000000e+00> : vector<8x512xf32>
    %2 = tpu.matmul %0, %1, %cst {dimension_numbers = #tpu.dot_dimension_numbers<[1], [0], [0], [1], [0, 0, 1, 1], [], []>} : vector<8x776xbf16>, vector<776x512xbf16>, vector<8x512xf32> -> vector<8x512xf32>
    %c0_3 = arith.constant 0 : index
    %c0_4 = arith.constant 0 : index
    %3 = vector.load %arg3[%c0_3, %c0_4] : memref<1x512xf32, #tpu.memory_space<vmem>>, vector<1x512xf32>
    %4 = vector.broadcast %3 : vector<1x512xf32> to vector<8x512xf32>
    %5 = arith.addf %2, %4 : vector<8x512xf32>
    %cst_5 = arith.constant 0.000000e+00 : f32
    %6 = vector.broadcast %cst_5 : f32 to vector<8x512xf32>
    %7 = arith.maximumf %5, %6 : vector<8x512xf32>
    %8 = arith.truncf %7 : vector<8x512xf32> to vector<8x512xbf16>
    %c0_6 = arith.constant 0 : index
    %c0_7 = arith.constant 0 : index
    %9 = vector.load %arg4[%c0_6, %c0_7] : memref<512x256xbf16, #tpu.memory_space<vmem>>, vector<512x256xbf16>
    %cst_8 = arith.constant dense<0.000000e+00> : vector<8x256xf32>
    %10 = tpu.matmul %8, %9, %cst_8 {dimension_numbers = #tpu.dot_dimension_numbers<[1], [0], [0], [1], [0, 0, 1, 1], [], []>} : vector<8x512xbf16>, vector<512x256xbf16>, vector<8x256xf32> -> vector<8x256xf32>
    %c0_9 = arith.constant 0 : index
    %c0_10 = arith.constant 0 : index
    %11 = vector.load %arg5[%c0_9, %c0_10] : memref<1x256xf32, #tpu.memory_space<vmem>>, vector<1x256xf32>
    %12 = vector.broadcast %11 : vector<1x256xf32> to vector<8x256xf32>
    %13 = arith.addf %10, %12 : vector<8x256xf32>
    %cst_11 = arith.constant 0.000000e+00 : f32
    %14 = vector.broadcast %cst_11 : f32 to vector<8x256xf32>
    %15 = arith.maximumf %13, %14 : vector<8x256xf32>
    %16 = arith.truncf %15 : vector<8x256xf32> to vector<8x256xbf16>
    %c0_12 = arith.constant 0 : index
    %c0_13 = arith.constant 0 : index
    %17 = vector.load %arg6[%c0_12, %c0_13] : memref<256x128xbf16, #tpu.memory_space<vmem>>, vector<256x128xbf16>
    %cst_14 = arith.constant dense<0.000000e+00> : vector<8x128xf32>
    %18 = tpu.matmul %16, %17, %cst_14 {dimension_numbers = #tpu.dot_dimension_numbers<[1], [0], [0], [1], [0, 0, 1, 1], [], []>} : vector<8x256xbf16>, vector<256x128xbf16>, vector<8x128xf32> -> vector<8x128xf32>
    %c0_15 = arith.constant 0 : index
    %c0_16 = arith.constant 0 : index
    %19 = vector.load %arg7[%c0_15, %c0_16] : memref<1x128xf32, #tpu.memory_space<vmem>>, vector<1x128xf32>
    %20 = vector.broadcast %19 : vector<1x128xf32> to vector<8x128xf32>
    %21 = arith.addf %18, %20 : vector<8x128xf32>
    %cst_17 = arith.constant 0.000000e+00 : f32
    %22 = vector.broadcast %cst_17 : f32 to vector<8x128xf32>
    %23 = arith.maximumf %21, %22 : vector<8x128xf32>
    %c0_18 = arith.constant 0 : index
    %c0_19 = arith.constant 0 : index
    %24 = vector.load %arg8[%c0_18, %c0_19] : memref<1x128xf32, #tpu.memory_space<vmem>>, vector<1x128xf32>
    %25 = vector.broadcast %24 : vector<1x128xf32> to vector<8x128xf32>
    %26 = arith.mulf %23, %25 : vector<8x128xf32>
    %cst_20 = arith.constant dense<0.000000e+00> : vector<8xf32>
    %27 = vector.multi_reduction <add>, %26, %cst_20 [1] : vector<8x128xf32> to vector<8xf32>
    %28 = vector.shape_cast %27 : vector<8xf32> to vector<8x1xf32>
    %c0_21 = arith.constant 0 : index
    %c0_22 = arith.constant 0 : index
    %29 = vector.load %arg9[%c0_21, %c0_22] : memref<1x1xf32, #tpu.memory_space<vmem>>, vector<1x1xf32>
    %30 = vector.broadcast %29 : vector<1x1xf32> to vector<8x1xf32>
    %31 = arith.addf %28, %30 : vector<8x1xf32>
    %cst_23 = arith.constant 0.000000e+00 : f32
    %32 = vector.broadcast %cst_23 : f32 to vector<8x1xf32>
    %33 = arith.subf %32, %31 : vector<8x1xf32>
    %34 = math.exp %33 : vector<8x1xf32>
    %cst_24 = arith.constant 1.000000e+00 : f32
    %35 = vector.broadcast %cst_24 : f32 to vector<8x1xf32>
    %36 = arith.addf %35, %34 : vector<8x1xf32>
    %37 = tpu.reciprocal %36 : vector<8x1xf32> -> vector<8x1xf32>
    %c0_25 = arith.constant 0 : index
    %c0_26 = arith.constant 0 : index
    %38 = vector.load %arg10[%c0_25, %c0_26] : memref<8x1xf32, #tpu.memory_space<vmem>>, vector<8x1xf32>
    tpu.vector_store %arg10[%c0_25, %c0_26], %37 {strides = array<i32>} : memref<8x1xf32, #tpu.memory_space<vmem>>, vector<8x1xf32>,
    return
  }
  func.func @transform_0(%arg0: i32) -> (i32, i32) {
    %c0_i32 = arith.constant 0 : i32
    %c0_i32_0 = arith.constant 0 : i32
    return %arg0, %c0_i32 : i32, i32
  }
  func.func @transform_1(%arg0: i32) -> (i32, i32) {
    %c0_i32 = arith.constant 0 : i32
    %c0_i32_0 = arith.constant 0 : i32
    %c0_i32_1 = arith.constant 0 : i32
    return %c0_i32, %c0_i32_0 : i32, i32
  }
  func.func @transform_2(%arg0: i32) -> (i32, i32) {
    %c0_i32 = arith.constant 0 : i32
    %c0_i32_0 = arith.constant 0 : i32
    %c0_i32_1 = arith.constant 0 : i32
    return %c0_i32, %c0_i32_0 : i32, i32
  }
  func.func @transform_3(%arg0: i32) -> (i32, i32) {
    %c0_i32 = arith.constant 0 : i32
    %c0_i32_0 = arith.constant 0 : i32
    %c0_i32_1 = arith.constant 0 : i32
    return %c0_i32, %c0_i32_0 : i32, i32
  }
  func.func @transform_4(%arg0: i32) -> (i32, i32) {
    %c0_i32 = arith.constant 0 : i32
    %c0_i32_0 = arith.constant 0 : i32
    %c0_i32_1 = arith.constant 0 : i32
    return %c0_i32, %c0_i32_0 : i32, i32
  }
  func.func @transform_5(%arg0: i32) -> (i32, i32) {
    %c0_i32 = arith.constant 0 : i32
    %c0_i32_0 = arith.constant 0 : i32
    %c0_i32_1 = arith.constant 0 : i32
    return %c0_i32, %c0_i32_0 : i32, i32
  }
  func.func @transform_6(%arg0: i32) -> (i32, i32) {
    %c0_i32 = arith.constant 0 : i32
    %c0_i32_0 = arith.constant 0 : i32
    %c0_i32_1 = arith.constant 0 : i32
    return %c0_i32, %c0_i32_0 : i32, i32
  }
  func.func @transform_7(%arg0: i32) -> (i32, i32) {
    %c0_i32 = arith.constant 0 : i32
    %c0_i32_0 = arith.constant 0 : i32
    %c0_i32_1 = arith.constant 0 : i32
    return %c0_i32, %c0_i32_0 : i32, i32
  }
  func.func @transform_8(%arg0: i32) -> (i32, i32) {
    %c0_i32 = arith.constant 0 : i32
    %c0_i32_0 = arith.constant 0 : i32
    %c0_i32_1 = arith.constant 0 : i32
    return %c0_i32, %c0_i32_0 : i32, i32
  }
  func.func @transform_9(%arg0: i32) -> (i32, i32) {
    %c0_i32 = arith.constant 0 : i32
    %c0_i32_0 = arith.constant 0 : i32
    return %arg0, %c0_i32 : i32, i32
  }
}

</mosaic_0001>

<llo_original>
// kernel: tpu_custom_call.1
$region0: #{tpu_custom_call.1}
  #allocation0 [shape = 'u32[]', space=smem, size = 0x4, offset = 0x4, fixed_abs, tag = 'smem constant byte address 0x4 - core index']
  #allocation1 [shape = 'u32[144,128]{1,0:T(1,128)}', space=vmem, size = 0x12000, scoped, tag = 'internal scratch']
  #allocation2 [shape = 'f32[1,1]{1,0:T(1,128)S(1)}', space=vmem, size = 0x200, scoped, tag = 'scoped memory for tpu_custom_call.1']
  %s0 = inlined_call_operand.hbm [shape: bf16[8,776], index: 0, kind: input, shape index: {}]
  %s1 = inlined_call_operand.hbm [shape: bf16[776,512], index: 1, kind: input, shape index: {}]
  %s2 = inlined_call_operand.vmem [shape: f32[1,512], index: 2, kind: input, shape index: {}]
  %s3 = inlined_call_operand.hbm [shape: bf16[512,256], index: 3, kind: input, shape index: {}]
  %s4 = inlined_call_operand.vmem [shape: f32[1,256], index: 4, kind: input, shape index: {}]
  %s5 = inlined_call_operand.hbm [shape: bf16[256,128], index: 5, kind: input, shape index: {}]
  %s6 = inlined_call_operand.vmem [shape: f32[1,128], index: 6, kind: input, shape index: {}]
  %s7 = inlined_call_operand.vmem [shape: f32[1,128], index: 7, kind: input, shape index: {}]
  %s8 = inlined_call_operand.<no memory space> [shape: f32[1,1], index: 8, kind: input, shape index: {}]
  %s9 = inlined_call_operand.vmem [shape: f32[8,1], index: 9, kind: output, shape index: {}]
  %s10 = sld [smem:[#allocation0]]
  $region62: #{tpu_custom_call.1} parent=0
    _
  %s12 = ssub.s32 1, %s10
  %s13 = scalar_select 0, %s12, %s10
  %v14 = vstv %s8
  %15 = vst [vmem:[#allocation2] sm:$0x1] %v14
  $region1: #{tpu_custom_call.1} parent=0
    #allocation3 [shape = 'u8[14336]{0}', space=vmem, size = 0x3800, scoped, tag = 'input window, operand 0, single buffered']
    #allocation4 [shape = 's32[1]{0}', space=sflag, size = 0x4, scoped, tag = 'scoped memory for tpu_custom_call.1']
    #allocation5 [shape = 'u8[794624]{0}', space=vmem, size = 0xc2000, scoped, tag = 'input window, operand 1, single buffered']
    #allocation6 [shape = 's32[1]{0}', space=sflag, size = 0x4, scoped, tag = 'scoped memory for tpu_custom_call.1']
    #allocation7 [shape = 'u8[262144]{0}', space=vmem, size = 0x40000, scoped, tag = 'input window, operand 3, single buffered']
    #allocation8 [shape = 'u8[65536]{0}', space=vmem, size = 0x10000, scoped, tag = 'input window, operand 5, single buffered']
    #allocation9 [shape = 's32[1]{0}', space=sflag, size = 0x4, scoped, tag = 'scoped memory for tpu_custom_call.1']
    %16 = vsyncpa [#allocation4], 0
    %17 = vsyncpa [#allocation6], 0
    %18 = vsyncpa [#allocation9], 0
    // Predicated region
    $region2: #{tpu_custom_call.1} parent=1 // pred_check
      _
    $region3: #{tpu_custom_call.1} parent=1 // pred_check_branch
      %20 = sbr.rel (0) target = $region5
    $region4: #{tpu_custom_call.1} parent=1 // pred_region
      %s22 = ssub.s32 448, 448
      %23 = vsyncadd [#allocation4], %s22
      %s25 = sshll.u32 [#allocation3], 4
      %s26 = int_to_ptr.vmem [resolvable:$true] %s25
      %28 = dma.hbm_to_vmem [thread:$0]  %s0, 448, %s26, [#allocation4]
    $region5: #{tpu_custom_call.1} parent=1 // pred_fallthru
      _
    // Predicated region
    $region6: #{tpu_custom_call.1} parent=1 // pred_check
      _
    $region7: #{tpu_custom_call.1} parent=1 // pred_check_branch
      %30 = sbr.rel (0) target = $region9
    $region8: #{tpu_custom_call.1} parent=1 // pred_region
      %s32 = ssub.s32 24832, 24832
      %33 = vsyncadd [#allocation6], %s32
      %s34 = sshll.u32 [#allocation5], 4
      %s35 = int_to_ptr.vmem [resolvable:$true] %s34
      %40 = dma.hbm_to_vmem [thread:$0]  %s1, 24832, %s35, [#allocation6], 256, 256, 16
    $region9: #{tpu_custom_call.1} parent=1 // pred_fallthru
      _
    // Predicated region
    $region10: #{tpu_custom_call.1} parent=1 // pred_check
      _
    $region11: #{tpu_custom_call.1} parent=1 // pred_check_branch
      %42 = sbr.rel (0) target = $region13
    $region12: #{tpu_custom_call.1} parent=1 // pred_region
      _
    $region13: #{tpu_custom_call.1} parent=1 // pred_fallthru
      _
    // Predicated region
    $region14: #{tpu_custom_call.1} parent=1 // pred_check
      _
    $region15: #{tpu_custom_call.1} parent=1 // pred_check_branch
      %44 = sbr.rel (0) target = $region17
    $region16: #{tpu_custom_call.1} parent=1 // pred_region
      %s46 = ssub.s32 8192, 8192
      %47 = vsyncadd [#allocation6], %s46
      %s48 = sshll.u32 [#allocation7], 4
      %s49 = int_to_ptr.vmem [resolvable:$true] %s48
      %54 = dma.hbm_to_vmem [thread:$0]  %s3, 8192, %s49, [#allocation6], 128, 128, 8
    $region17: #{tpu_custom_call.1} parent=1 // pred_fallthru
      _
    // Predicated region
    $region18: #{tpu_custom_call.1} parent=1 // pred_check
      _
    $region19: #{tpu_custom_call.1} parent=1 // pred_check_branch
      %56 = sbr.rel (0) target = $region21
    $region20: #{tpu_custom_call.1} parent=1 // pred_region
      _
    $region21: #{tpu_custom_call.1} parent=1 // pred_fallthru
      _
    // Predicated region
    $region22: #{tpu_custom_call.1} parent=1 // pred_check
      _
    $region23: #{tpu_custom_call.1} parent=1 // pred_check_branch
      %58 = sbr.rel (0) target = $region25
    $region24: #{tpu_custom_call.1} parent=1 // pred_region
      %s60 = ssub.s32 2048, 2048
      %61 = vsyncadd [#allocation9], %s60
      %s62 = sshll.u32 [#allocation8], 4
      %s63 = int_to_ptr.vmem [resolvable:$true] %s62
      %68 = dma.hbm_to_vmem [thread:$0]  %s5, 2048, %s63, [#allocation9], 64, 64, 4
    $region25: #{tpu_custom_call.1} parent=1 // pred_fallthru
      _
    // Predicated region
    $region26: #{tpu_custom_call.1} parent=1 // pred_check
      _
    $region27: #{tpu_custom_call.1} parent=1 // pred_check_branch
      %70 = sbr.rel (0) target = $region29
    $region28: #{tpu_custom_call.1} parent=1 // pred_region
      _
    $region29: #{tpu_custom_call.1} parent=1 // pred_fallthru
      _
    // Predicated region
    $region30: #{tpu_custom_call.1} parent=1 // pred_check
      _
    $region31: #{tpu_custom_call.1} parent=1 // pred_check_branch
      %72 = sbr.rel (0) target = $region33
    $region32: #{tpu_custom_call.1} parent=1 // pred_region
      _
    $region33: #{tpu_custom_call.1} parent=1 // pred_fallthru
      _
    // Predicated region
    $region34: #{tpu_custom_call.1} parent=1 // pred_check
      _
    $region35: #{tpu_custom_call.1} parent=1 // pred_check_branch
      %74 = sbr.rel (0) target = $region37
    $region36: #{tpu_custom_call.1} parent=1 // pred_region
      _
    $region37: #{tpu_custom_call.1} parent=1 // pred_fallthru
      _
    // Predicated region
    $region38: #{tpu_custom_call.1} parent=1 // pred_check
      _
    $region39: #{tpu_custom_call.1} parent=1 // pred_check_branch
      %76 = sbr.rel (0) target = $region41
    $region40: #{tpu_custom_call.1} parent=1 // pred_region
      %77 = dma.done [#allocation4], 448
    $region41: #{tpu_custom_call.1} parent=1 // pred_fallthru
      _
    // Predicated region
    $region42: #{tpu_custom_call.1} parent=1 // pred_check
      _
    $region43: #{tpu_custom_call.1} parent=1 // pred_check_branch
      %79 = sbr.rel (0) target = $region45
    $region44: #{tpu_custom_call.1} parent=1 // pred_region
      %80 = dma.done [#allocation6], 24832
    $region45: #{tpu_custom_call.1} parent=1 // pred_fallthru
      _
    // Predicated region
    $region46: #{tpu_custom_call.1} parent=1 // pred_check
      _
    $region47: #{tpu_custom_call.1} parent=1 // pred_check_branch
      %82 = sbr.rel (0) target = $region49
    $region48: #{tpu_custom_call.1} parent=1 // pred_region
      %83 = dma.done [#allocation6], 8192
    $region49: #{tpu_custom_call.1} parent=1 // pred_fallthru
      _
    // Predicated region
    $region50: #{tpu_custom_call.1} parent=1 // pred_check
      _
    $region51: #{tpu_custom_call.1} parent=1 // pred_check_branch
      %85 = sbr.rel (0) target = $region53
    $region52: #{tpu_custom_call.1} parent=1 // pred_region
      %86 = dma.done [#allocation9], 2048
    $region53: #{tpu_custom_call.1} parent=1 // pred_fallthru
      _
    %v88 = vld [vmem:[#allocation3] sm:$0xff]
    %v89 = vld [vmem:[#allocation3 + $0x8] sm:$0xff]
    %v90 = vld [vmem:[#allocation3 + $0x10] sm:$0xff]
    %v91 = vld [vmem:[#allocation3 + $0x18] sm:$0xf]
    %v92 = vld [vmem:[#allocation5] sm:$0xff]
    %v93 = vld [vmem:[#allocation5 + $0x8] sm:$0xff]
    %v94 = vld [vmem:[#allocation5 + $0x10] sm:$0xff]
    %v95 = vld [vmem:[#allocation5 + $0x18] sm:$0xff]
    %v96 = vld [vmem:[#allocation5 + $0x20] sm:$0xff]
    %v97 = vld [vmem:[#allocation5 + $0x28] sm:$0xff]
    %v98 = vld [vmem:[#allocation5 + $0x30] sm:$0xff]
    %v99 = vld [vmem:[#allocation5 + $0x38] sm:$0xff]
    %v100 = vld [vmem:[#allocation5 + $0x40] sm:$0xff]
    %v101 = vld [vmem:[#allocation5 + $0x48] sm:$0xff]
    %v102 = vld [vmem:[#allocation5 + $0x50] sm:$0xff]
    %v103 = vld [vmem:[#allocation5 + $0x58] sm:$0xff]
    %v104 = vld [vmem:[#allocation5 + $0x60] sm:$0xff]
    %v105 = vld [vmem:[#allocation5 + $0x68] sm:$0xff]
    %v106 = vld [vmem:[#allocation5 + $0x70] sm:$0xff]
    %v107 = vld [vmem:[#allocation5 + $0x78] sm:$0xff]
    %v108 = vld [vmem:[#allocation5 + $0x80] sm:$0xff]
    %v109 = vld [vmem:[#allocation5 + $0x88] sm:$0xff]
    %v110 = vld [vmem:[#allocation5 + $0x90] sm:$0xff]
    %v111 = vld [vmem:[#allocation5 + $0x98] sm:$0xff]
    %v112 = vld [vmem:[#allocation5 + $0xa0] sm:$0xff]
    %v113 = vld [vmem:[#allocation5 + $0xa8] sm:$0xff]
    %v114 = vld [vmem:[#allocation5 + $0xb0] sm:$0xff]
    %v115 = vld [vmem:[#allocation5 + $0xb8] sm:$0xff]
    %v116 = vld [vmem:[#allocation5 + $0xc0] sm:$0xff]
    %v117 = vld [vmem:[#allocation5 + $0xc8] sm:$0xff]
    %v118 = vld [vmem:[#allocation5 + $0xd0] sm:$0xff]
    %v119 = vld [vmem:[#allocation5 + $0xd8] sm:$0xff]
    %v120 = vld [vmem:[#allocation5 + $0xe0] sm:$0xff]
    %v121 = vld [vmem:[#allocation5 + $0xe8] sm:$0xff]
    %v122 = vld [vmem:[#allocation5 + $0xf0] sm:$0xff]
    %v123 = vld [vmem:[#allocation5 + $0xf8] sm:$0xff]
    %v124 = vld [vmem:[#allocation5 + $0x100] sm:$0xff]
    %v125 = vld [vmem:[#allocation5 + $0x108] sm:$0xff]
    %v126 = vld [vmem:[#allocation5 + $0x110] sm:$0xff]
    %v127 = vld [vmem:[#allocation5 + $0x118] sm:$0xff]
    %v128 = vld [vmem:[#allocation5 + $0x120] sm:$0xff]
    %v129 = vld [vmem:[#allocation5 + $0x128] sm:$0xff]
    %v130 = vld [vmem:[#allocation5 + $0x130] sm:$0xff]
    %v131 = vld [vmem:[#allocation5 + $0x138] sm:$0xff]
    %v132 = vld [vmem:[#allocation5 + $0x140] sm:$0xff]
    %v133 = vld [vmem:[#allocation5 + $0x148] sm:$0xff]
    %v134 = vld [vmem:[#allocation5 + $0x150] sm:$0xff]
    %v135 = vld [vmem:[#allocation5 + $0x158] sm:$0xff]
    %v136 = vld [vmem:[#allocation5 + $0x160] sm:$0xff]
    %v137 = vld [vmem:[#allocation5 + $0x168] sm:$0xff]
    %v138 = vld [vmem:[#allocation5 + $0x170] sm:$0xff]
    %v139 = vld [vmem:[#allocation5 + $0x178] sm:$0xff]
    %v140 = vld [vmem:[#allocation5 + $0x180] sm:$0xff]
    %v141 = vld [vmem:[#allocation5 + $0x188] sm:$0xff]
    %v142 = vld [vmem:[#allocation5 + $0x190] sm:$0xff]
    %v143 = vld [vmem:[#allocation5 + $0x198] sm:$0xff]
    %v144 = vld [vmem:[#allocation5 + $0x1a0] sm:$0xff]
    %v145 = vld [vmem:[#allocation5 + $0x1a8] sm:$0xff]
    %v146 = vld [vmem:[#allocation5 + $0x1b0] sm:$0xff]
    %v147 = vld [vmem:[#allocation5 + $0x1b8] sm:$0xff]
    %v148 = vld [vmem:[#allocation5 + $0x1c0] sm:$0xff]
    %v149 = vld [vmem:[#allocation5 + $0x1c8] sm:$0xff]
    %v150 = vld [vmem:[#allocation5 + $0x1d0] sm:$0xff]
    %v151 = vld [vmem:[#allocation5 + $0x1d8] sm:$0xff]
    %v152 = vld [vmem:[#allocation5 + $0x1e0] sm:$0xff]
    %v153 = vld [vmem:[#allocation5 + $0x1e8] sm:$0xff]
    %v154 = vld [vmem:[#allocation5 + $0x1f0] sm:$0xff]
    %v155 = vld [vmem:[#allocation5 + $0x1f8] sm:$0xff]
    %v156 = vld [vmem:[#allocation5 + $0x200] sm:$0xff]
    %v157 = vld [vmem:[#allocation5 + $0x208] sm:$0xff]
    %v158 = vld [vmem:[#allocation5 + $0x210] sm:$0xff]
    %v159 = vld [vmem:[#allocation5 + $0x218] sm:$0xff]
    %v160 = vld [vmem:[#allocation5 + $0x220] sm:$0xff]
    %v161 = vld [vmem:[#allocation5 + $0x228] sm:$0xff]
    %v162 = vld [vmem:[#allocation5 + $0x230] sm:$0xff]
    %v163 = vld [vmem:[#allocation5 + $0x238] sm:$0xff]
    %v164 = vld [vmem:[#allocation5 + $0x240] sm:$0xff]
    %v165 = vld [vmem:[#allocation5 + $0x248] sm:$0xff]
    %v166 = vld [vmem:[#allocation5 + $0x250] sm:$0xff]
    %v167 = vld [vmem:[#allocation5 + $0x258] sm:$0xff]
    %v168 = vld [vmem:[#allocation5 + $0x260] sm:$0xff]
    %v169 = vld [vmem:[#allocation5 + $0x268] sm:$0xff]
    %v170 = vld [vmem:[#allocation5 + $0x270] sm:$0xff]
    %v171 = vld [vmem:[#allocation5 + $0x278] sm:$0xff]
    %v172 = vld [vmem:[#allocation5 + $0x280] sm:$0xff]
    %v173 = vld [vmem:[#allocation5 + $0x288] sm:$0xff]
    %v174 = vld [vmem:[#allocation5 + $0x290] sm:$0xff]
    %v175 = vld [vmem:[#allocation5 + $0x298] sm:$0xff]
    %v176 = vld [vmem:[#allocation5 + $0x2a0] sm:$0xff]
    %v177 = vld [vmem:[#allocation5 + $0x2a8] sm:$0xff]
    %v178 = vld [vmem:[#allocation5 + $0x2b0] sm:$0xff]
    %v179 = vld [vmem:[#allocation5 + $0x2b8] sm:$0xff]
    %v180 = vld [vmem:[#allocation5 + $0x2c0] sm:$0xff]
    %v181 = vld [vmem:[#allocation5 + $0x2c8] sm:$0xff]
    %v182 = vld [vmem:[#allocation5 + $0x2d0] sm:$0xff]
    %v183 = vld [vmem:[#allocation5 + $0x2d8] sm:$0xff]
    %v184 = vld [vmem:[#allocation5 + $0x2e0] sm:$0xff]
    %v185 = vld [vmem:[#allocation5 + $0x2e8] sm:$0xff]
    %v186 = vld [vmem:[#allocation5 + $0x2f0] sm:$0xff]
    %v187 = vld [vmem:[#allocation5 + $0x2f8] sm:$0xff]
    %v188 = vld [vmem:[#allocation5 + $0x300] sm:$0xff]
    %v189 = vld [vmem:[#allocation5 + $0x308] sm:$0xff]
    %v190 = vld [vmem:[#allocation5 + $0x310] sm:$0xff]
    %v191 = vld [vmem:[#allocation5 + $0x318] sm:$0xff]
    %v192 = vld [vmem:[#allocation5 + $0x320] sm:$0xff]
    %v193 = vld [vmem:[#allocation5 + $0x328] sm:$0xff]
    %v194 = vld [vmem:[#allocation5 + $0x330] sm:$0xff]
    %v195 = vld [vmem:[#allocation5 + $0x338] sm:$0xff]
    %v196 = vld [vmem:[#allocation5 + $0x340] sm:$0xff]
    %v197 = vld [vmem:[#allocation5 + $0x348] sm:$0xff]
    %v198 = vld [vmem:[#allocation5 + $0x350] sm:$0xff]
    %v199 = vld [vmem:[#allocation5 + $0x358] sm:$0xff]
    %v200 = vld [vmem:[#allocation5 + $0x360] sm:$0xff]
    %v201 = vld [vmem:[#allocation5 + $0x368] sm:$0xff]
    %v202 = vld [vmem:[#allocation5 + $0x370] sm:$0xff]
    %v203 = vld [vmem:[#allocation5 + $0x378] sm:$0xff]
    %v204 = vld [vmem:[#allocation5 + $0x380] sm:$0xff]
    %v205 = vld [vmem:[#allocation5 + $0x388] sm:$0xff]
    %v206 = vld [vmem:[#allocation5 + $0x390] sm:$0xff]
    %v207 = vld [vmem:[#allocation5 + $0x398] sm:$0xff]
    %v208 = vld [vmem:[#allocation5 + $0x3a0] sm:$0xff]
    %v209 = vld [vmem:[#allocation5 + $0x3a8] sm:$0xff]
    %v210 = vld [vmem:[#allocation5 + $0x3b0] sm:$0xff]
    %v211 = vld [vmem:[#allocation5 + $0x3b8] sm:$0xff]
    %v212 = vld [vmem:[#allocation5 + $0x3c0] sm:$0xff]
    %v213 = vld [vmem:[#allocation5 + $0x3c8] sm:$0xff]
    %v214 = vld [vmem:[#allocation5 + $0x3d0] sm:$0xff]
    %v215 = vld [vmem:[#allocation5 + $0x3d8] sm:$0xff]
    %v216 = vld [vmem:[#allocation5 + $0x3e0] sm:$0xff]
    %v217 = vld [vmem:[#allocation5 + $0x3e8] sm:$0xff]
    %v218 = vld [vmem:[#allocation5 + $0x3f0] sm:$0xff]
    %v219 = vld [vmem:[#allocation5 + $0x3f8] sm:$0xff]
    %v220 = vld [vmem:[#allocation5 + $0x400] sm:$0xff]
    %v221 = vld [vmem:[#allocation5 + $0x408] sm:$0xff]
    %v222 = vld [vmem:[#allocation5 + $0x410] sm:$0xff]
    %v223 = vld [vmem:[#allocation5 + $0x418] sm:$0xff]
    %v224 = vld [vmem:[#allocation5 + $0x420] sm:$0xff]
    %v225 = vld [vmem:[#allocation5 + $0x428] sm:$0xff]
    %v226 = vld [vmem:[#allocation5 + $0x430] sm:$0xff]
    %v227 = vld [vmem:[#allocation5 + $0x438] sm:$0xff]
    %v228 = vld [vmem:[#allocation5 + $0x440] sm:$0xff]
    %v229 = vld [vmem:[#allocation5 + $0x448] sm:$0xff]
    %v230 = vld [vmem:[#allocation5 + $0x450] sm:$0xff]
    %v231 = vld [vmem:[#allocation5 + $0x458] sm:$0xff]
    %v232 = vld [vmem:[#allocation5 + $0x460] sm:$0xff]
    %v233 = vld [vmem:[#allocation5 + $0x468] sm:$0xff]
    %v234 = vld [vmem:[#allocation5 + $0x470] sm:$0xff]
    %v235 = vld [vmem:[#allocation5 + $0x478] sm:$0xff]
    %v236 = vld [vmem:[#allocation5 + $0x480] sm:$0xff]
    %v237 = vld [vmem:[#allocation5 + $0x488] sm:$0xff]
    %v238 = vld [vmem:[#allocation5 + $0x490] sm:$0xff]
    %v239 = vld [vmem:[#allocation5 + $0x498] sm:$0xff]
    %v240 = vld [vmem:[#allocation5 + $0x4a0] sm:$0xff]
    %v241 = vld [vmem:[#allocation5 + $0x4a8] sm:$0xff]
    %v242 = vld [vmem:[#allocation5 + $0x4b0] sm:$0xff]
    %v243 = vld [vmem:[#allocation5 + $0x4b8] sm:$0xff]
    %v244 = vld [vmem:[#allocation5 + $0x4c0] sm:$0xff]
    %v245 = vld [vmem:[#allocation5 + $0x4c8] sm:$0xff]
    %v246 = vld [vmem:[#allocation5 + $0x4d0] sm:$0xff]
    %v247 = vld [vmem:[#allocation5 + $0x4d8] sm:$0xff]
    %v248 = vld [vmem:[#allocation5 + $0x4e0] sm:$0xff]
    %v249 = vld [vmem:[#allocation5 + $0x4e8] sm:$0xff]
    %v250 = vld [vmem:[#allocation5 + $0x4f0] sm:$0xff]
    %v251 = vld [vmem:[#allocation5 + $0x4f8] sm:$0xff]
    %v252 = vld [vmem:[#allocation5 + $0x500] sm:$0xff]
    %v253 = vld [vmem:[#allocation5 + $0x508] sm:$0xff]
    %v254 = vld [vmem:[#allocation5 + $0x510] sm:$0xff]
    %v255 = vld [vmem:[#allocation5 + $0x518] sm:$0xff]
    %v256 = vld [vmem:[#allocation5 + $0x520] sm:$0xff]
    %v257 = vld [vmem:[#allocation5 + $0x528] sm:$0xff]
    %v258 = vld [vmem:[#allocation5 + $0x530] sm:$0xff]
    %v259 = vld [vmem:[#allocation5 + $0x538] sm:$0xff]
    %v260 = vld [vmem:[#allocation5 + $0x540] sm:$0xff]
    %v261 = vld [vmem:[#allocation5 + $0x548] sm:$0xff]
    %v262 = vld [vmem:[#allocation5 + $0x550] sm:$0xff]
    %v263 = vld [vmem:[#allocation5 + $0x558] sm:$0xff]
    %v264 = vld [vmem:[#allocation5 + $0x560] sm:$0xff]
    %v265 = vld [vmem:[#allocation5 + $0x568] sm:$0xff]
    %v266 = vld [vmem:[#allocation5 + $0x570] sm:$0xff]
    %v267 = vld [vmem:[#allocation5 + $0x578] sm:$0xff]
    %v268 = vld [vmem:[#allocation5 + $0x580] sm:$0xff]
    %v269 = vld [vmem:[#allocation5 + $0x588] sm:$0xff]
    %v270 = vld [vmem:[#allocation5 + $0x590] sm:$0xff]
    %v271 = vld [vmem:[#allocation5 + $0x598] sm:$0xff]
    %v272 = vld [vmem:[#allocation5 + $0x5a0] sm:$0xff]
    %v273 = vld [vmem:[#allocation5 + $0x5a8] sm:$0xff]
    %v274 = vld [vmem:[#allocation5 + $0x5b0] sm:$0xff]
    %v275 = vld [vmem:[#allocation5 + $0x5b8] sm:$0xff]
    %v276 = vld [vmem:[#allocation5 + $0x5c0] sm:$0xff]
    %v277 = vld [vmem:[#allocation5 + $0x5c8] sm:$0xff]
    %v278 = vld [vmem:[#allocation5 + $0x5d0] sm:$0xff]
    %v279 = vld [vmem:[#allocation5 + $0x5d8] sm:$0xff]
    %v280 = vld [vmem:[#allocation5 + $0x5e0] sm:$0xff]
    %v281 = vld [vmem:[#allocation5 + $0x5e8] sm:$0xff]
    %v282 = vld [vmem:[#allocation5 + $0x5f0] sm:$0xff]
    %v283 = vld [vmem:[#allocation5 + $0x5f8] sm:$0xff]
    %v284 = vld [vmem:[#allocation5 + $0x600] sm:$0xff]
    %v285 = vld [vmem:[#allocation5 + $0x608] sm:$0xff]
    %v286 = vld [vmem:[%s2] sm:$0xf]
    %v288 = vlaneseq
    %v289 = vshrl.u32 %v288, 7
    %v290 = vsub.s32 0, %v289
    %v291 = vrot.slane %v286, %v290
    %v292 = vlaneseq
    %v293 = vshrl.u32 %v292, 7
    %v294 = vsub.s32 1, %v293
    %v295 = vrot.slane %v286, %v294
    %v296 = vlaneseq
    %v297 = vshrl.u32 %v296, 7
    %v298 = vsub.s32 2, %v297
    %v299 = vrot.slane %v286, %v298
    %v300 = vlaneseq
    %v301 = vshrl.u32 %v300, 7
    %v302 = vsub.s32 3, %v301
    %v303 = vrot.slane %v286, %v302
    %v312 = vunpack.c.l.b16 %v88
    %v313 = vunpack.c.h.b16 %v88
    %v314 = vunpack.c.l.b16 %v89
    %v315 = vunpack.c.h.b16 %v89
    %v316 = vunpack.c.l.b16 %v90
    %v317 = vunpack.c.h.b16 %v90
    %v318 = vunpack.c.l.b16 %v91
    %v319 = vpack.c.b16 %v312, %v312
    %v320 = vpack.c.b16 %v313, %v313
    %v321 = vpack.c.b16 %v314, %v314
    %v322 = vpack.c.b16 %v315, %v315
    %v323 = vpack.c.b16 %v316, %v316
    %v324 = vpack.c.b16 %v317, %v317
    %v325 = vpack.c.b16 %v318, %v318
    %v526 = vunpack.c.l.b16 %v92
    %v527 = vunpack.c.h.b16 %v92
    %v528 = vunpack.c.l.b16 %v93
    %v529 = vunpack.c.h.b16 %v93
    %v530 = vunpack.c.l.b16 %v94
    %v531 = vunpack.c.h.b16 %v94
    %v532 = vunpack.c.l.b16 %v95
    %v533 = vunpack.c.h.b16 %v95
    %v534 = vunpack.c.l.b16 %v96
    %v535 = vunpack.c.h.b16 %v96
    %v536 = vunpack.c.l.b16 %v97
    %v537 = vunpack.c.h.b16 %v97
    %v538 = vunpack.c.l.b16 %v98
    %v539 = vunpack.c.h.b16 %v98
    %v540 = vunpack.c.l.b16 %v99
    %v541 = vunpack.c.h.b16 %v99
    %v542 = vunpack.c.l.b16 %v100
    %v543 = vunpack.c.h.b16 %v100
    %v544 = vunpack.c.l.b16 %v101
    %v545 = vunpack.c.h.b16 %v101
    %v546 = vunpack.c.l.b16 %v102
    %v547 = vunpack.c.h.b16 %v102
    %v548 = vunpack.c.l.b16 %v103
    %v549 = vunpack.c.h.b16 %v103
    %v550 = vunpack.c.l.b16 %v104
    %v551 = vunpack.c.h.b16 %v104
    %v552 = vunpack.c.l.b16 %v105
    %v553 = vunpack.c.h.b16 %v105
    %v554 = vunpack.c.l.b16 %v106
    %v555 = vunpack.c.h.b16 %v106
    %v556 = vunpack.c.l.b16 %v107
    %v557 = vunpack.c.h.b16 %v107
    %v558 = vunpack.c.l.b16 %v108
    %v559 = vunpack.c.h.b16 %v108
    %v560 = vunpack.c.l.b16 %v109
    %v561 = vunpack.c.h.b16 %v109
    %v562 = vunpack.c.l.b16 %v110
    %v563 = vunpack.c.h.b16 %v110
    %v564 = vunpack.c.l.b16 %v111
    %v565 = vunpack.c.h.b16 %v111
    %v566 = vunpack.c.l.b16 %v112
    %v567 = vunpack.c.h.b16 %v112
    %v568 = vunpack.c.l.b16 %v113
    %v569 = vunpack.c.h.b16 %v113
    %v570 = vunpack.c.l.b16 %v114
    %v571 = vunpack.c.h.b16 %v114
    %v572 = vunpack.c.l.b16 %v115
    %v573 = vunpack.c.h.b16 %v115
    %v574 = vunpack.c.l.b16 %v116
    %v575 = vunpack.c.h.b16 %v116
    %v576 = vunpack.c.l.b16 %v117
    %v577 = vunpack.c.h.b16 %v117
    %v578 = vunpack.c.l.b16 %v118
    %v579 = vunpack.c.h.b16 %v118
    %v580 = vunpack.c.l.b16 %v119
    %v581 = vunpack.c.h.b16 %v119
    %v582 = vunpack.c.l.b16 %v120
    %v583 = vunpack.c.h.b16 %v120
    %v584 = vunpack.c.l.b16 %v121
    %v585 = vunpack.c.h.b16 %v121
    %v586 = vunpack.c.l.b16 %v122
    %v587 = vunpack.c.h.b16 %v122
    %v588 = vunpack.c.l.b16 %v123
    %v589 = vunpack.c.h.b16 %v123
    %v590 = vunpack.c.l.b16 %v124
    %v591 = vunpack.c.h.b16 %v124
    %v592 = vunpack.c.l.b16 %v125
    %v593 = vunpack.c.h.b16 %v125
    %v594 = vunpack.c.l.b16 %v126
    %v595 = vunpack.c.h.b16 %v126
    %v596 = vunpack.c.l.b16 %v127
    %v597 = vunpack.c.h.b16 %v127
    %v598 = vunpack.c.l.b16 %v128
    %v599 = vunpack.c.h.b16 %v128
    %v600 = vunpack.c.l.b16 %v129
    %v601 = vunpack.c.h.b16 %v129
    %v602 = vunpack.c.l.b16 %v130
    %v603 = vunpack.c.h.b16 %v130
    %v604 = vunpack.c.l.b16 %v131
    %v605 = vunpack.c.h.b16 %v131
    %v606 = vunpack.c.l.b16 %v132
    %v607 = vunpack.c.h.b16 %v132
    %v608 = vunpack.c.l.b16 %v133
    %v609 = vunpack.c.h.b16 %v133
    %v610 = vunpack.c.l.b16 %v134
    %v611 = vunpack.c.h.b16 %v134
    %v612 = vunpack.c.l.b16 %v135
    %v613 = vunpack.c.h.b16 %v135
    %v614 = vunpack.c.l.b16 %v136
    %v615 = vunpack.c.h.b16 %v136
    %v616 = vunpack.c.l.b16 %v137
    %v617 = vunpack.c.h.b16 %v137
    %v618 = vunpack.c.l.b16 %v138
    %v619 = vunpack.c.h.b16 %v138
    %v620 = vunpack.c.l.b16 %v139
    %v621 = vunpack.c.h.b16 %v139
    %v622 = vunpack.c.l.b16 %v140
    %v623 = vunpack.c.h.b16 %v140
    %v624 = vunpack.c.l.b16 %v141
    %v625 = vunpack.c.h.b16 %v141
    %v626 = vunpack.c.l.b16 %v142
    %v627 = vunpack.c.h.b16 %v142
    %v628 = vunpack.c.l.b16 %v143
    %v629 = vunpack.c.h.b16 %v143
    %v630 = vunpack.c.l.b16 %v144
    %v631 = vunpack.c.h.b16 %v144
    %v632 = vunpack.c.l.b16 %v145
    %v633 = vunpack.c.h.b16 %v145
    %v634 = vunpack.c.l.b16 %v146
    %v635 = vunpack.c.h.b16 %v146
    %v636 = vunpack.c.l.b16 %v147
    %v637 = vunpack.c.h.b16 %v147
    %v638 = vunpack.c.l.b16 %v148
    %v639 = vunpack.c.h.b16 %v148
    %v640 = vunpack.c.l.b16 %v149
    %v641 = vunpack.c.h.b16 %v149
    %v642 = vunpack.c.l.b16 %v150
    %v643 = vunpack.c.h.b16 %v150
    %v644 = vunpack.c.l.b16 %v151
    %v645 = vunpack.c.h.b16 %v151
    %v646 = vunpack.c.l.b16 %v152
    %v647 = vunpack.c.h.b16 %v152
    %v648 = vunpack.c.l.b16 %v153
    %v649 = vunpack.c.h.b16 %v153
    %v650 = vunpack.c.l.b16 %v154
    %v651 = vunpack.c.h.b16 %v154
    %v652 = vunpack.c.l.b16 %v155
    %v653 = vunpack.c.h.b16 %v155
    %v654 = vunpack.c.l.b16 %v156
    %v655 = vunpack.c.h.b16 %v156
    %v656 = vunpack.c.l.b16 %v157
    %v657 = vunpack.c.h.b16 %v157
    %v658 = vunpack.c.l.b16 %v158
    %v659 = vunpack.c.h.b16 %v158
    %v660 = vunpack.c.l.b16 %v159
    %v661 = vunpack.c.h.b16 %v159
    %v662 = vunpack.c.l.b16 %v160
    %v663 = vunpack.c.h.b16 %v160
    %v664 = vunpack.c.l.b16 %v161
    %v665 = vunpack.c.h.b16 %v161
    %v666 = vunpack.c.l.b16 %v162
    %v667 = vunpack.c.h.b16 %v162
    %v668 = vunpack.c.l.b16 %v163
    %v669 = vunpack.c.h.b16 %v163
    %v670 = vunpack.c.l.b16 %v164
    %v671 = vunpack.c.h.b16 %v164
    %v672 = vunpack.c.l.b16 %v165
    %v673 = vunpack.c.h.b16 %v165
    %v674 = vunpack.c.l.b16 %v166
    %v675 = vunpack.c.h.b16 %v166
    %v676 = vunpack.c.l.b16 %v167
    %v677 = vunpack.c.h.b16 %v167
    %v678 = vunpack.c.l.b16 %v168
    %v679 = vunpack.c.h.b16 %v168
    %v680 = vunpack.c.l.b16 %v169
    %v681 = vunpack.c.h.b16 %v169
    %v682 = vunpack.c.l.b16 %v170
    %v683 = vunpack.c.h.b16 %v170
    %v684 = vunpack.c.l.b16 %v171
    %v685 = vunpack.c.h.b16 %v171
    %v686 = vunpack.c.l.b16 %v172
    %v687 = vunpack.c.h.b16 %v172
    %v688 = vunpack.c.l.b16 %v173
    %v689 = vunpack.c.h.b16 %v173
    %v690 = vunpack.c.l.b16 %v174
    %v691 = vunpack.c.h.b16 %v174
    %v692 = vunpack.c.l.b16 %v175
    %v693 = vunpack.c.h.b16 %v175
    %v694 = vunpack.c.l.b16 %v176
    %v695 = vunpack.c.h.b16 %v176
    %v696 = vunpack.c.l.b16 %v177
    %v697 = vunpack.c.h.b16 %v177
    %v698 = vunpack.c.l.b16 %v178
    %v699 = vunpack.c.h.b16 %v178
    %v700 = vunpack.c.l.b16 %v179
    %v701 = vunpack.c.h.b16 %v179
    %v702 = vunpack.c.l.b16 %v180
    %v703 = vunpack.c.h.b16 %v180
    %v704 = vunpack.c.l.b16 %v181
    %v705 = vunpack.c.h.b16 %v181
    %v706 = vunpack.c.l.b16 %v182
    %v707 = vunpack.c.h.b16 %v182
    %v708 = vunpack.c.l.b16 %v183
    %v709 = vunpack.c.h.b16 %v183
    %v710 = vunpack.c.l.b16 %v184
    %v711 = vunpack.c.h.b16 %v184
    %v712 = vunpack.c.l.b16 %v185
    %v713 = vunpack.c.h.b16 %v185
    %v714 = vunpack.c.l.b16 %v186
    %v715 = vunpack.c.h.b16 %v186
    %v716 = vunpack.c.l.b16 %v187
    %v717 = vunpack.c.h.b16 %v187
    %v718 = vunpack.c.l.b16 %v188
    %v719 = vunpack.c.h.b16 %v188
    %v720 = vunpack.c.l.b16 %v189
    %v721 = vunpack.c.h.b16 %v189
    %v722 = vunpack.c.l.b16 %v190
    %v723 = vunpack.c.h.b16 %v190
    %v724 = vunpack.c.l.b16 %v191
    %v725 = vunpack.c.h.b16 %v191
    %v726 = vunpack.c.l.b16 %v192
    %v727 = vunpack.c.h.b16 %v192
    %v728 = vunpack.c.l.b16 %v193
    %v729 = vunpack.c.h.b16 %v193
    %v730 = vunpack.c.l.b16 %v194
    %v731 = vunpack.c.h.b16 %v194
    %v732 = vunpack.c.l.b16 %v195
    %v733 = vunpack.c.h.b16 %v195
    %v734 = vunpack.c.l.b16 %v196
    %v735 = vunpack.c.h.b16 %v196
    %v736 = vunpack.c.l.b16 %v197
    %v737 = vunpack.c.h.b16 %v197
    %v738 = vunpack.c.l.b16 %v198
    %v739 = vunpack.c.h.b16 %v198
    %v740 = vunpack.c.l.b16 %v199
    %v741 = vunpack.c.h.b16 %v199
    %v742 = vunpack.c.l.b16 %v200
    %v743 = vunpack.c.h.b16 %v200
    %v744 = vunpack.c.l.b16 %v201
    %v745 = vunpack.c.h.b16 %v201
    %v746 = vunpack.c.l.b16 %v202
    %v747 = vunpack.c.h.b16 %v202
    %v748 = vunpack.c.l.b16 %v203
    %v749 = vunpack.c.h.b16 %v203
    %v750 = vunpack.c.l.b16 %v204
    %v751 = vunpack.c.h.b16 %v204
    %v752 = vunpack.c.l.b16 %v205
    %v753 = vunpack.c.h.b16 %v205
    %v754 = vunpack.c.l.b16 %v206
    %v755 = vunpack.c.h.b16 %v206
    %v756 = vunpack.c.l.b16 %v207
    %v757 = vunpack.c.h.b16 %v207
    %v758 = vunpack.c.l.b16 %v208
    %v759 = vunpack.c.h.b16 %v208
    %v760 = vunpack.c.l.b16 %v209
    %v761 = vunpack.c.h.b16 %v209
    %v762 = vunpack.c.l.b16 %v210
    %v763 = vunpack.c.h.b16 %v210
    %v764 = vunpack.c.l.b16 %v211
    %v765 = vunpack.c.h.b16 %v211
    %v766 = vunpack.c.l.b16 %v212
    %v767 = vunpack.c.h.b16 %v212
    %v768 = vunpack.c.l.b16 %v213
    %v769 = vunpack.c.h.b16 %v213
    %v770 = vunpack.c.l.b16 %v214
    %v771 = vunpack.c.h.b16 %v214
    %v772 = vunpack.c.l.b16 %v215
    %v773 = vunpack.c.h.b16 %v215
    %v774 = vunpack.c.l.b16 %v216
    %v775 = vunpack.c.h.b16 %v216
    %v776 = vunpack.c.l.b16 %v217
    %v777 = vunpack.c.h.b16 %v217
    %v778 = vunpack.c.l.b16 %v218
    %v779 = vunpack.c.h.b16 %v218
    %v780 = vunpack.c.l.b16 %v219
    %v781 = vunpack.c.h.b16 %v219
    %v782 = vunpack.c.l.b16 %v220
    %v783 = vunpack.c.h.b16 %v220
    %v784 = vunpack.c.l.b16 %v221
    %v785 = vunpack.c.h.b16 %v221
    %v786 = vunpack.c.l.b16 %v222
    %v787 = vunpack.c.h.b16 %v222
    %v788 = vunpack.c.l.b16 %v223
    %v789 = vunpack.c.h.b16 %v223
    %v790 = vunpack.c.l.b16 %v224
    %v791 = vunpack.c.h.b16 %v224
    %v792 = vunpack.c.l.b16 %v225
    %v793 = vunpack.c.h.b16 %v225
    %v794 = vunpack.c.l.b16 %v226
    %v795 = vunpack.c.h.b16 %v226
    %v796 = vunpack.c.l.b16 %v227
    %v797 = vunpack.c.h.b16 %v227
    %v798 = vunpack.c.l.b16 %v228
    %v799 = vunpack.c.h.b16 %v228
    %v800 = vunpack.c.l.b16 %v229
    %v801 = vunpack.c.h.b16 %v229
    %v802 = vunpack.c.l.b16 %v230
    %v803 = vunpack.c.h.b16 %v230
    %v804 = vunpack.c.l.b16 %v231
    %v805 = vunpack.c.h.b16 %v231
    %v806 = vunpack.c.l.b16 %v232
    %v807 = vunpack.c.h.b16 %v232
    %v808 = vunpack.c.l.b16 %v233
    %v809 = vunpack.c.h.b16 %v233
    %v810 = vunpack.c.l.b16 %v234
    %v811 = vunpack.c.h.b16 %v234
    %v812 = vunpack.c.l.b16 %v235
    %v813 = vunpack.c.h.b16 %v235
    %v814 = vunpack.c.l.b16 %v236
    %v815 = vunpack.c.h.b16 %v236
    %v816 = vunpack.c.l.b16 %v237
    %v817 = vunpack.c.h.b16 %v237
    %v818 = vunpack.c.l.b16 %v238
    %v819 = vunpack.c.h.b16 %v238
    %v820 = vunpack.c.l.b16 %v239
    %v821 = vunpack.c.h.b16 %v239
    %v822 = vunpack.c.l.b16 %v240
    %v823 = vunpack.c.h.b16 %v240
    %v824 = vunpack.c.l.b16 %v241
    %v825 = vunpack.c.h.b16 %v241
    %v826 = vunpack.c.l.b16 %v242
    %v827 = vunpack.c.h.b16 %v242
    %v828 = vunpack.c.l.b16 %v243
    %v829 = vunpack.c.h.b16 %v243
    %v830 = vunpack.c.l.b16 %v244
    %v831 = vunpack.c.h.b16 %v244
    %v832 = vunpack.c.l.b16 %v245
    %v833 = vunpack.c.h.b16 %v245
    %v834 = vunpack.c.l.b16 %v246
    %v835 = vunpack.c.h.b16 %v246
    %v836 = vunpack.c.l.b16 %v247
    %v837 = vunpack.c.h.b16 %v247
    %v838 = vunpack.c.l.b16 %v248
    %v839 = vunpack.c.h.b16 %v248
    %v840 = vunpack.c.l.b16 %v249
    %v841 = vunpack.c.h.b16 %v249
    %v842 = vunpack.c.l.b16 %v250
    %v843 = vunpack.c.h.b16 %v250
    %v844 = vunpack.c.l.b16 %v251
    %v845 = vunpack.c.h.b16 %v251
    %v846 = vunpack.c.l.b16 %v252
    %v847 = vunpack.c.h.b16 %v252
    %v848 = vunpack.c.l.b16 %v253
    %v849 = vunpack.c.h.b16 %v253
    %v850 = vunpack.c.l.b16 %v254
    %v851 = vunpack.c.h.b16 %v254
    %v852 = vunpack.c.l.b16 %v255
    %v853 = vunpack.c.h.b16 %v255
    %v854 = vunpack.c.l.b16 %v256
    %v855 = vunpack.c.h.b16 %v256
    %v856 = vunpack.c.l.b16 %v257
    %v857 = vunpack.c.h.b16 %v257
    %v858 = vunpack.c.l.b16 %v258
    %v859 = vunpack.c.h.b16 %v258
    %v860 = vunpack.c.l.b16 %v259
    %v861 = vunpack.c.h.b16 %v259
    %v862 = vunpack.c.l.b16 %v260
    %v863 = vunpack.c.h.b16 %v260
    %v864 = vunpack.c.l.b16 %v261
    %v865 = vunpack.c.h.b16 %v261
    %v866 = vunpack.c.l.b16 %v262
    %v867 = vunpack.c.h.b16 %v262
    %v868 = vunpack.c.l.b16 %v263
    %v869 = vunpack.c.h.b16 %v263
    %v870 = vunpack.c.l.b16 %v264
    %v871 = vunpack.c.h.b16 %v264
    %v872 = vunpack.c.l.b16 %v265
    %v873 = vunpack.c.h.b16 %v265
    %v874 = vunpack.c.l.b16 %v266
    %v875 = vunpack.c.h.b16 %v266
    %v876 = vunpack.c.l.b16 %v267
    %v877 = vunpack.c.h.b16 %v267
    %v878 = vunpack.c.l.b16 %v268
    %v879 = vunpack.c.h.b16 %v268
    %v880 = vunpack.c.l.b16 %v269
    %v881 = vunpack.c.h.b16 %v269
    %v882 = vunpack.c.l.b16 %v270
    %v883 = vunpack.c.h.b16 %v270
    %v884 = vunpack.c.l.b16 %v271
    %v885 = vunpack.c.h.b16 %v271
    %v886 = vunpack.c.l.b16 %v272
    %v887 = vunpack.c.h.b16 %v272
    %v888 = vunpack.c.l.b16 %v273
    %v889 = vunpack.c.h.b16 %v273
    %v890 = vunpack.c.l.b16 %v274
    %v891 = vunpack.c.h.b16 %v274
    %v892 = vunpack.c.l.b16 %v275
    %v893 = vunpack.c.h.b16 %v275
    %v894 = vunpack.c.l.b16 %v276
    %v895 = vunpack.c.h.b16 %v276
    %v896 = vunpack.c.l.b16 %v277
    %v897 = vunpack.c.h.b16 %v277
    %v898 = vunpack.c.l.b16 %v278
    %v899 = vunpack.c.h.b16 %v278
    %v900 = vunpack.c.l.b16 %v279
    %v901 = vunpack.c.h.b16 %v279
    %v902 = vunpack.c.l.b16 %v280
    %v903 = vunpack.c.h.b16 %v280
    %v904 = vunpack.c.l.b16 %v281
    %v905 = vunpack.c.h.b16 %v281
    %v906 = vunpack.c.l.b16 %v282
    %v907 = vunpack.c.h.b16 %v282
    %v908 = vunpack.c.l.b16 %v283
    %v909 = vunpack.c.h.b16 %v283
    %v910 = vunpack.c.l.b16 %v284
    %v911 = vunpack.c.h.b16 %v284
    %v912 = vunpack.c.l.b16 %v285
    %v913 = vunpack.c.h.b16 %v285
    %v914 = vpack.c.b16 %v530, %v526
    %v915 = vpack.c.b16 %v531, %v527
    %v916 = vpack.c.b16 %v532, %v528
    %v917 = vpack.c.b16 %v533, %v529
    %v918 = vpack.c.b16 %v538, %v534
    %v919 = vpack.c.b16 %v539, %v535
    %v920 = vpack.c.b16 %v540, %v536
    %v921 = vpack.c.b16 %v541, %v537
    %v922 = vpack.c.b16 %v546, %v542
    %v923 = vpack.c.b16 %v547, %v543
    %v924 = vpack.c.b16 %v548, %v544
    %v925 = vpack.c.b16 %v549, %v545
    %v926 = vpack.c.b16 %v554, %v550
    %v927 = vpack.c.b16 %v555, %v551
    %v928 = vpack.c.b16 %v556, %v552
    %v929 = vpack.c.b16 %v557, %v553
    %v930 = vpack.c.b16 %v562, %v558
    %v931 = vpack.c.b16 %v563, %v559
    %v932 = vpack.c.b16 %v564, %v560
    %v933 = vpack.c.b16 %v565, %v561
    %v934 = vpack.c.b16 %v570, %v566
    %v935 = vpack.c.b16 %v571, %v567
    %v936 = vpack.c.b16 %v572, %v568
    %v937 = vpack.c.b16 %v573, %v569
    %v938 = vpack.c.b16 %v578, %v574
    %v939 = vpack.c.b16 %v579, %v575
    %v940 = vpack.c.b16 %v580, %v576
    %v941 = vpack.c.b16 %v581, %v577
    %v942 = vpack.c.b16 %v586, %v582
    %v943 = vpack.c.b16 %v587, %v583
    %v944 = vpack.c.b16 %v588, %v584
    %v945 = vpack.c.b16 %v589, %v585
    %v946 = vpack.c.b16 %v594, %v590
    %v947 = vpack.c.b16 %v595, %v591
    %v948 = vpack.c.b16 %v596, %v592
    %v949 = vpack.c.b16 %v597, %v593
    %v950 = vpack.c.b16 %v602, %v598
    %v951 = vpack.c.b16 %v603, %v599
    %v952 = vpack.c.b16 %v604, %v600
    %v953 = vpack.c.b16 %v605, %v601
    %v954 = vpack.c.b16 %v610, %v606
    %v955 = vpack.c.b16 %v611, %v607
    %v956 = vpack.c.b16 %v612, %v608
    %v957 = vpack.c.b16 %v613, %v609
    %v958 = vpack.c.b16 %v618, %v614
    %v959 = vpack.c.b16 %v619, %v615
    %v960 = vpack.c.b16 %v620, %v616
    %v961 = vpack.c.b16 %v621, %v617
    %v962 = vpack.c.b16 %v626, %v622
    %v963 = vpack.c.b16 %v627, %v623
    %v964 = vpack.c.b16 %v628, %v624
    %v965 = vpack.c.b16 %v629, %v625
    %v966 = vpack.c.b16 %v634, %v630
    %v967 = vpack.c.b16 %v635, %v631
    %v968 = vpack.c.b16 %v636, %v632
    %v969 = vpack.c.b16 %v637, %v633
    %v970 = vpack.c.b16 %v642, %v638
    %v971 = vpack.c.b16 %v643, %v639
    %v972 = vpack.c.b16 %v644, %v640
    %v973 = vpack.c.b16 %v645, %v641
    %v974 = vpack.c.b16 %v650, %v646
    %v975 = vpack.c.b16 %v651, %v647
    %v976 = vpack.c.b16 %v652, %v648
    %v977 = vpack.c.b16 %v653, %v649
    %v978 = vpack.c.b16 %v658, %v654
    %v979 = vpack.c.b16 %v659, %v655
    %v980 = vpack.c.b16 %v660, %v656
    %v981 = vpack.c.b16 %v661, %v657
    %v982 = vpack.c.b16 %v666, %v662
    %v983 = vpack.c.b16 %v667, %v663
    %v984 = vpack.c.b16 %v668, %v664
    %v985 = vpack.c.b16 %v669, %v665
    %v986 = vpack.c.b16 %v674, %v670
    %v987 = vpack.c.b16 %v675, %v671
    %v988 = vpack.c.b16 %v676, %v672
    %v989 = vpack.c.b16 %v677, %v673
    %v990 = vpack.c.b16 %v682, %v678
    %v991 = vpack.c.b16 %v683, %v679
    %v992 = vpack.c.b16 %v684, %v680
    %v993 = vpack.c.b16 %v685, %v681
    %v994 = vpack.c.b16 %v690, %v686
    %v995 = vpack.c.b16 %v691, %v687
    %v996 = vpack.c.b16 %v692, %v688
    %v997 = vpack.c.b16 %v693, %v689
    %v998 = vpack.c.b16 %v698, %v694
    %v999 = vpack.c.b16 %v699, %v695
    %v1000 = vpack.c.b16 %v700, %v696
    %v1001 = vpack.c.b16 %v701, %v697
    %v1002 = vpack.c.b16 %v706, %v702
    %v1003 = vpack.c.b16 %v707, %v703
    %v1004 = vpack.c.b16 %v708, %v704
    %v1005 = vpack.c.b16 %v709, %v705
    %v1006 = vpack.c.b16 %v714, %v710
    %v1007 = vpack.c.b16 %v715, %v711
    %v1008 = vpack.c.b16 %v716, %v712
    %v1009 = vpack.c.b16 %v717, %v713
    %v1010 = vpack.c.b16 %v722, %v718
    %v1011 = vpack.c.b16 %v723, %v719
    %v1012 = vpack.c.b16 %v724, %v720
    %v1013 = vpack.c.b16 %v725, %v721
    %v1014 = vpack.c.b16 %v730, %v726
    %v1015 = vpack.c.b16 %v731, %v727
    %v1016 = vpack.c.b16 %v732, %v728
    %v1017 = vpack.c.b16 %v733, %v729
    %v1018 = vpack.c.b16 %v738, %v734
    %v1019 = vpack.c.b16 %v739, %v735
    %v1020 = vpack.c.b16 %v740, %v736
    %v1021 = vpack.c.b16 %v741, %v737
    %v1022 = vpack.c.b16 %v746, %v742
    %v1023 = vpack.c.b16 %v747, %v743
    %v1024 = vpack.c.b16 %v748, %v744
    %v1025 = vpack.c.b16 %v749, %v745
    %v1026 = vpack.c.b16 %v754, %v750
    %v1027 = vpack.c.b16 %v755, %v751
    %v1028 = vpack.c.b16 %v756, %v752
    %v1029 = vpack.c.b16 %v757, %v753
    %v1030 = vpack.c.b16 %v762, %v758
    %v1031 = vpack.c.b16 %v763, %v759
    %v1032 = vpack.c.b16 %v764, %v760
    %v1033 = vpack.c.b16 %v765, %v761
    %v1034 = vpack.c.b16 %v770, %v766
    %v1035 = vpack.c.b16 %v771, %v767
    %v1036 = vpack.c.b16 %v772, %v768
    %v1037 = vpack.c.b16 %v773, %v769
    %v1038 = vpack.c.b16 %v778, %v774
    %v1039 = vpack.c.b16 %v779, %v775
    %v1040 = vpack.c.b16 %v780, %v776
    %v1041 = vpack.c.b16 %v781, %v777
    %v1042 = vpack.c.b16 %v786, %v782
    %v1043 = vpack.c.b16 %v787, %v783
    %v1044 = vpack.c.b16 %v788, %v784
    %v1045 = vpack.c.b16 %v789, %v785
    %v1046 = vpack.c.b16 %v794, %v790
    %v1047 = vpack.c.b16 %v795, %v791
    %v1048 = vpack.c.b16 %v796, %v792
    %v1049 = vpack.c.b16 %v797, %v793
    %v1050 = vpack.c.b16 %v802, %v798
    %v1051 = vpack.c.b16 %v803, %v799
    %v1052 = vpack.c.b16 %v804, %v800
    %v1053 = vpack.c.b16 %v805, %v801
    %v1054 = vpack.c.b16 %v810, %v806
    %v1055 = vpack.c.b16 %v811, %v807
    %v1056 = vpack.c.b16 %v812, %v808
    %v1057 = vpack.c.b16 %v813, %v809
    %v1058 = vpack.c.b16 %v818, %v814
    %v1059 = vpack.c.b16 %v819, %v815
    %v1060 = vpack.c.b16 %v820, %v816
    %v1061 = vpack.c.b16 %v821, %v817
    %v1062 = vpack.c.b16 %v826, %v822
    %v1063 = vpack.c.b16 %v827, %v823
    %v1064 = vpack.c.b16 %v828, %v824
    %v1065 = vpack.c.b16 %v829, %v825
    %v1066 = vpack.c.b16 %v834, %v830
    %v1067 = vpack.c.b16 %v835, %v831
    %v1068 = vpack.c.b16 %v836, %v832
    %v1069 = vpack.c.b16 %v837, %v833
    %v1070 = vpack.c.b16 %v842, %v838
    %v1071 = vpack.c.b16 %v843, %v839
    %v1072 = vpack.c.b16 %v844, %v840
    %v1073 = vpack.c.b16 %v845, %v841
    %v1074 = vpack.c.b16 %v850, %v846
    %v1075 = vpack.c.b16 %v851, %v847
    %v1076 = vpack.c.b16 %v852, %v848
    %v1077 = vpack.c.b16 %v853, %v849
    %v1078 = vpack.c.b16 %v858, %v854
    %v1079 = vpack.c.b16 %v859, %v855
    %v1080 = vpack.c.b16 %v860, %v856
    %v1081 = vpack.c.b16 %v861, %v857
    %v1082 = vpack.c.b16 %v866, %v862
    %v1083 = vpack.c.b16 %v867, %v863
    %v1084 = vpack.c.b16 %v868, %v864
    %v1085 = vpack.c.b16 %v869, %v865
    %v1086 = vpack.c.b16 %v874, %v870
    %v1087 = vpack.c.b16 %v875, %v871
    %v1088 = vpack.c.b16 %v876, %v872
    %v1089 = vpack.c.b16 %v877, %v873
    %v1090 = vpack.c.b16 %v882, %v878
    %v1091 = vpack.c.b16 %v883, %v879
    %v1092 = vpack.c.b16 %v884, %v880
    %v1093 = vpack.c.b16 %v885, %v881
    %v1094 = vpack.c.b16 %v890, %v886
    %v1095 = vpack.c.b16 %v891, %v887
    %v1096 = vpack.c.b16 %v892, %v888
    %v1097 = vpack.c.b16 %v893, %v889
    %v1098 = vpack.c.b16 %v898, %v894
    %v1099 = vpack.c.b16 %v899, %v895
    %v1100 = vpack.c.b16 %v900, %v896
    %v1101 = vpack.c.b16 %v901, %v897
    %v1102 = vpack.c.b16 %v906, %v902
    %v1103 = vpack.c.b16 %v907, %v903
    %v1104 = vpack.c.b16 %v908, %v904
    %v1105 = vpack.c.b16 %v909, %v905
    %v1106 = vpack.c.b16 %v910, %v910
    %v1107 = vpack.c.b16 %v911, %v911
    %v1108 = vpack.c.b16 %v912, %v912
    %v1109 = vpack.c.b16 %v913, %v913
    %vm1302 = vcmask 64512
    %v1304 = vsel %vm1302, %v325, 0
    %vm1306 = vcmask 1043456
    %v1308 = vsel %vm1306, %v1106, 0
    %v1311 = vsel %vm1306, %v1107, 0
    %v1314 = vsel %vm1306, %v1108, 0
    %v1317 = vsel %vm1306, %v1109, 0
    %1319 = vmatprep.subr.bf16.mxu0 %v915
    %1320 = vmatpush1.bf16.msra.mxu0 %v914
    %1321 = vmatprep.subr.bf16.mxu0 %v919
    %1322 = vmatpush1.bf16.msra.mxu0 %v918
    %1323 = vmatprep.subr.bf16.mxu0 %v923
    %1324 = vmatpush1.bf16.msra.mxu0 %v922
    %1325 = vmatprep.subr.bf16.mxu0 %v927
    %1326 = vmatpush1.bf16.msra.mxu0 %v926
    %1327 = vmatprep.subr.bf16.mxu0 %v931
    %1328 = vmatpush1.bf16.msra.mxu0 %v930
    %1329 = vmatprep.subr.bf16.mxu0 %v935
    %1330 = vmatpush1.bf16.msra.mxu0 %v934
    %1331 = vmatprep.subr.bf16.mxu0 %v939
    %1332 = vmatpush1.bf16.msra.mxu0 %v938
    %1333 = vmatprep.subr.bf16.mxu0 %v943
    %1334 = vmatpush1.bf16.msra.mxu0 %v942
    %1335 = vmatprep.subr.bf16.mxu0 %v947
    %1336 = vmatpush1.bf16.msra.mxu0 %v946
    %1337 = vmatprep.subr.bf16.mxu0 %v951
    %1338 = vmatpush1.bf16.msra.mxu0 %v950
    %1339 = vmatprep.subr.bf16.mxu0 %v955
    %1340 = vmatpush1.bf16.msra.mxu0 %v954
    %1341 = vmatprep.subr.bf16.mxu0 %v959
    %1342 = vmatpush1.bf16.msra.mxu0 %v958
    %1343 = vmatprep.subr.bf16.mxu0 %v963
    %1344 = vmatpush1.bf16.msra.mxu0 %v962
    %1345 = vmatprep.subr.bf16.mxu0 %v967
    %1346 = vmatpush1.bf16.msra.mxu0 %v966
    %1347 = vmatprep.subr.bf16.mxu0 %v971
    %1348 = vmatpush1.bf16.msra.mxu0 %v970
    %1349 = vmatprep.subr.bf16.mxu0 %v975
    %1350 = vmatpush1.bf16.msra.mxu0 %v974
    %1351 = vmatprep.mubr.bf16.mxu0 %v320
    %1352 = vmatmul.mubr.bf16.gmra.mrb[0].mxu0 %v319
    %v1353 = vpop.f32.mrb[0].mxu0
    %v1354 = vadd.f32 %v291, %v1353
    %v1355 = vpop.f32.mrb[0].mxu0
    %v1356 = vadd.f32 %v295, %v1355
    %v1357 = vpop.f32.mrb[0].mxu0
    %v1358 = vpop.f32.mrb[0].mxu0
    %1359 = vdwg.mxu0
    %1360 = vmatprep.subr.bf16.mxu0 %v979
    %1361 = vmatpush1.bf16.msra.mxu0 %v978
    %1362 = vmatprep.subr.bf16.mxu0 %v983
    %1363 = vmatpush1.bf16.msra.mxu0 %v982
    %1364 = vmatprep.subr.bf16.mxu0 %v987
    %1365 = vmatpush1.bf16.msra.mxu0 %v986
    %1366 = vmatprep.subr.bf16.mxu0 %v991
    %1367 = vmatpush1.bf16.msra.mxu0 %v990
    %1368 = vmatprep.subr.bf16.mxu0 %v995
    %1369 = vmatpush1.bf16.msra.mxu0 %v994
    %1370 = vmatprep.subr.bf16.mxu0 %v999
    %1371 = vmatpush1.bf16.msra.mxu0 %v998
    %1372 = vmatprep.subr.bf16.mxu0 %v1003
    %1373 = vmatpush1.bf16.msra.mxu0 %v1002
    %1374 = vmatprep.subr.bf16.mxu0 %v1007
    %1375 = vmatpush1.bf16.msra.mxu0 %v1006
    %1376 = vmatprep.subr.bf16.mxu0 %v1011
    %1377 = vmatpush1.bf16.msra.mxu0 %v1010
    %1378 = vmatprep.subr.bf16.mxu0 %v1015
    %1379 = vmatpush1.bf16.msra.mxu0 %v1014
    %1380 = vmatprep.subr.bf16.mxu0 %v1019
    %1381 = vmatpush1.bf16.msra.mxu0 %v1018
    %1382 = vmatprep.subr.bf16.mxu0 %v1023
    %1383 = vmatpush1.bf16.msra.mxu0 %v1022
    %1384 = vmatprep.subr.bf16.mxu0 %v1027
    %1385 = vmatpush1.bf16.msra.mxu0 %v1026
    %1386 = vmatprep.subr.bf16.mxu0 %v1031
    %1387 = vmatpush1.bf16.msra.mxu0 %v1030
    %1388 = vmatprep.subr.bf16.mxu0 %v1035
    %1389 = vmatpush1.bf16.msra.mxu0 %v1034
    %1390 = vmatprep.subr.bf16.mxu0 %v1039
    %1391 = vmatpush1.bf16.msra.mxu0 %v1038
    %1392 = vmatprep.mubr.bf16.mxu0 %v322
    %1393 = vmatmul.mubr.bf16.gmra.mrb[0].mxu0 %v321
    %v1394 = vpop.f32.mrb[0].mxu0
    %v1395 = vadd.f32 %v1354, %v1394
    %v1396 = vpop.f32.mrb[0].mxu0
    %v1397 = vadd.f32 %v1356, %v1396
    %v1398 = vpop.f32.mrb[0].mxu0
    %v1399 = vpop.f32.mrb[0].mxu0
    %1400 = vdwg.mxu0
    %1401 = vmatprep.subr.bf16.mxu0 %v1043
    %1402 = vmatpush1.bf16.msra.mxu0 %v1042
    %1403 = vmatprep.subr.bf16.mxu0 %v1047
    %1404 = vmatpush1.bf16.msra.mxu0 %v1046
    %1405 = vmatprep.subr.bf16.mxu0 %v1051
    %1406 = vmatpush1.bf16.msra.mxu0 %v1050
    %1407 = vmatprep.subr.bf16.mxu0 %v1055
    %1408 = vmatpush1.bf16.msra.mxu0 %v1054
    %1409 = vmatprep.subr.bf16.mxu0 %v1059
    %1410 = vmatpush1.bf16.msra.mxu0 %v1058
    %1411 = vmatprep.subr.bf16.mxu0 %v1063
    %1412 = vmatpush1.bf16.msra.mxu0 %v1062
    %1413 = vmatprep.subr.bf16.mxu0 %v1067
    %1414 = vmatpush1.bf16.msra.mxu0 %v1066
    %1415 = vmatprep.subr.bf16.mxu0 %v1071
    %1416 = vmatpush1.bf16.msra.mxu0 %v1070
    %1417 = vmatprep.subr.bf16.mxu0 %v1075
    %1418 = vmatpush1.bf16.msra.mxu0 %v1074
    %1419 = vmatprep.subr.bf16.mxu0 %v1079
    %1420 = vmatpush1.bf16.msra.mxu0 %v1078
    %1421 = vmatprep.subr.bf16.mxu0 %v1083
    %1422 = vmatpush1.bf16.msra.mxu0 %v1082
    %1423 = vmatprep.subr.bf16.mxu0 %v1087
    %1424 = vmatpush1.bf16.msra.mxu0 %v1086
    %1425 = vmatprep.subr.bf16.mxu0 %v1091
    %1426 = vmatpush1.bf16.msra.mxu0 %v1090
    %1427 = vmatprep.subr.bf16.mxu0 %v1095
    %1428 = vmatpush1.bf16.msra.mxu0 %v1094
    %1429 = vmatprep.subr.bf16.mxu0 %v1099
    %1430 = vmatpush1.bf16.msra.mxu0 %v1098
    %1431 = vmatprep.subr.bf16.mxu0 %v1103
    %1432 = vmatpush1.bf16.msra.mxu0 %v1102
    %1433 = vmatprep.mubr.bf16.mxu0 %v324
    %1434 = vmatmul.mubr.bf16.gmra.mrb[0].mxu0 %v323
    %v1435 = vpop.f32.mrb[0].mxu0
    %v1436 = vadd.f32 %v1395, %v1435
    %v1437 = vpop.f32.mrb[0].mxu0
    %v1438 = vadd.f32 %v1397, %v1437
    %v1439 = vpop.f32.mrb[0].mxu0
    %v1440 = vpop.f32.mrb[0].mxu0
    %1441 = vdwg.mxu0
    %1442 = vmatprep.subr.bf16.mxu0 %v1311
    %1443 = vmatpush1.bf16.msra.mxu0 %v1308
    %1444 = vmatprep.subr.bf16.mxu0 0
    %1445 = vmatpush1.bf16.msra.mxu0 0
    %1446 = vmatprep.subr.bf16.mxu0 0
    %1447 = vmatpush1.bf16.msra.mxu0 0
    %1448 = vmatprep.subr.bf16.mxu0 0
    %1449 = vmatpush1.bf16.msra.mxu0 0
    %1450 = vmatprep.subr.bf16.mxu0 0
    %1451 = vmatpush1.bf16.msra.mxu0 0
    %1452 = vmatprep.subr.bf16.mxu0 0
    %1453 = vmatpush1.bf16.msra.mxu0 0
    %1454 = vmatprep.subr.bf16.mxu0 0
    %1455 = vmatpush1.bf16.msra.mxu0 0
    %1456 = vmatprep.subr.bf16.mxu0 0
    %1457 = vmatpush1.bf16.msra.mxu0 0
    %1458 = vmatprep.subr.bf16.mxu0 0
    %1459 = vmatpush1.bf16.msra.mxu0 0
    %1460 = vmatprep.subr.bf16.mxu0 0
    %1461 = vmatpush1.bf16.msra.mxu0 0
    %1462 = vmatprep.subr.bf16.mxu0 0
    %1463 = vmatpush1.bf16.msra.mxu0 0
    %1464 = vmatprep.subr.bf16.mxu0 0
    %1465 = vmatpush1.bf16.msra.mxu0 0
    %1466 = vmatprep.subr.bf16.mxu0 0
    %1467 = vmatpush1.bf16.msra.mxu0 0
    %1468 = vmatprep.subr.bf16.mxu0 0
    %1469 = vmatpush1.bf16.msra.mxu0 0
    %1470 = vmatprep.subr.bf16.mxu0 0
    %1471 = vmatpush1.bf16.msra.mxu0 0
    %1472 = vmatprep.subr.bf16.mxu0 0
    %1473 = vmatpush1.bf16.msra.mxu0 0
    %1474 = vmatprep.mubr.bf16.mxu0 0
    %1475 = vmatmul.mubr.bf16.gmra.mrb[0].mxu0 %v1304
    %v1476 = vpop.f32.mrb[0].mxu0
    %v1477 = vadd.f32 %v1436, %v1476
    %v1478 = vpop.f32.mrb[0].mxu0
    %v1479 = vadd.f32 %v1438, %v1478
    %v1480 = vpop.f32.mrb[0].mxu0
    %v1481 = vpop.f32.mrb[0].mxu0
    %1482 = vdwg.mxu0
    %1483 = vmatprep.subr.bf16.mxu0 %v917
    %1484 = vmatpush1.bf16.msra.mxu0 %v916
    %1485 = vmatprep.subr.bf16.mxu0 %v921
    %1486 = vmatpush1.bf16.msra.mxu0 %v920
    %1487 = vmatprep.subr.bf16.mxu0 %v925
    %1488 = vmatpush1.bf16.msra.mxu0 %v924
    %1489 = vmatprep.subr.bf16.mxu0 %v929
    %1490 = vmatpush1.bf16.msra.mxu0 %v928
    %1491 = vmatprep.subr.bf16.mxu0 %v933
    %1492 = vmatpush1.bf16.msra.mxu0 %v932
    %1493 = vmatprep.subr.bf16.mxu0 %v937
    %1494 = vmatpush1.bf16.msra.mxu0 %v936
    %1495 = vmatprep.subr.bf16.mxu0 %v941
    %1496 = vmatpush1.bf16.msra.mxu0 %v940
    %1497 = vmatprep.subr.bf16.mxu0 %v945
    %1498 = vmatpush1.bf16.msra.mxu0 %v944
    %1499 = vmatprep.subr.bf16.mxu0 %v949
    %1500 = vmatpush1.bf16.msra.mxu0 %v948
    %1501 = vmatprep.subr.bf16.mxu0 %v953
    %1502 = vmatpush1.bf16.msra.mxu0 %v952
    %1503 = vmatprep.subr.bf16.mxu0 %v957
    %1504 = vmatpush1.bf16.msra.mxu0 %v956
    %1505 = vmatprep.subr.bf16.mxu0 %v961
    %1506 = vmatpush1.bf16.msra.mxu0 %v960
    %1507 = vmatprep.subr.bf16.mxu0 %v965
    %1508 = vmatpush1.bf16.msra.mxu0 %v964
    %1509 = vmatprep.subr.bf16.mxu0 %v969
    %1510 = vmatpush1.bf16.msra.mxu0 %v968
    %1511 = vmatprep.subr.bf16.mxu0 %v973
    %1512 = vmatpush1.bf16.msra.mxu0 %v972
    %1513 = vmatprep.subr.bf16.mxu0 %v977
    %1514 = vmatpush1.bf16.msra.mxu0 %v976
    %1515 = vmatprep.mubr.bf16.mxu0 %v320
    %1516 = vmatmul.mubr.bf16.gmra.mrb[0].mxu0 %v319
    %v1517 = vpop.f32.mrb[0].mxu0
    %v1518 = vadd.f32 %v299, %v1517
    %v1519 = vpop.f32.mrb[0].mxu0
    %v1520 = vadd.f32 %v303, %v1519
    %v1521 = vpop.f32.mrb[0].mxu0
    %v1522 = vpop.f32.mrb[0].mxu0
    %1523 = vdwg.mxu0
    %1524 = vmatprep.subr.bf16.mxu0 %v981
    %1525 = vmatpush1.bf16.msra.mxu0 %v980
    %1526 = vmatprep.subr.bf16.mxu0 %v985
    %1527 = vmatpush1.bf16.msra.mxu0 %v984
    %1528 = vmatprep.subr.bf16.mxu0 %v989
    %1529 = vmatpush1.bf16.msra.mxu0 %v988
    %1530 = vmatprep.subr.bf16.mxu0 %v993
    %1531 = vmatpush1.bf16.msra.mxu0 %v992
    %1532 = vmatprep.subr.bf16.mxu0 %v997
    %1533 = vmatpush1.bf16.msra.mxu0 %v996
    %1534 = vmatprep.subr.bf16.mxu0 %v1001
    %1535 = vmatpush1.bf16.msra.mxu0 %v1000
    %1536 = vmatprep.subr.bf16.mxu0 %v1005
    %1537 = vmatpush1.bf16.msra.mxu0 %v1004
    %1538 = vmatprep.subr.bf16.mxu0 %v1009
    %1539 = vmatpush1.bf16.msra.mxu0 %v1008
    %1540 = vmatprep.subr.bf16.mxu0 %v1013
    %1541 = vmatpush1.bf16.msra.mxu0 %v1012
    %1542 = vmatprep.subr.bf16.mxu0 %v1017
    %1543 = vmatpush1.bf16.msra.mxu0 %v1016
    %1544 = vmatprep.subr.bf16.mxu0 %v1021
    %1545 = vmatpush1.bf16.msra.mxu0 %v1020
    %1546 = vmatprep.subr.bf16.mxu0 %v1025
    %1547 = vmatpush1.bf16.msra.mxu0 %v1024
    %1548 = vmatprep.subr.bf16.mxu0 %v1029
    %1549 = vmatpush1.bf16.msra.mxu0 %v1028
    %1550 = vmatprep.subr.bf16.mxu0 %v1033
    %1551 = vmatpush1.bf16.msra.mxu0 %v1032
    %1552 = vmatprep.subr.bf16.mxu0 %v1037
    %1553 = vmatpush1.bf16.msra.mxu0 %v1036
    %1554 = vmatprep.subr.bf16.mxu0 %v1041
    %1555 = vmatpush1.bf16.msra.mxu0 %v1040
    %1556 = vmatprep.mubr.bf16.mxu0 %v322
    %1557 = vmatmul.mubr.bf16.gmra.mrb[0].mxu0 %v321
    %v1558 = vpop.f32.mrb[0].mxu0
    %v1559 = vadd.f32 %v1518, %v1558
    %v1560 = vpop.f32.mrb[0].mxu0
    %v1561 = vadd.f32 %v1520, %v1560
    %v1562 = vpop.f32.mrb[0].mxu0
    %v1563 = vpop.f32.mrb[0].mxu0
    %1564 = vdwg.mxu0
    %1565 = vmatprep.subr.bf16.mxu0 %v1045
    %1566 = vmatpush1.bf16.msra.mxu0 %v1044
    %1567 = vmatprep.subr.bf16.mxu0 %v1049
    %1568 = vmatpush1.bf16.msra.mxu0 %v1048
    %1569 = vmatprep.subr.bf16.mxu0 %v1053
    %1570 = vmatpush1.bf16.msra.mxu0 %v1052
    %1571 = vmatprep.subr.bf16.mxu0 %v1057
    %1572 = vmatpush1.bf16.msra.mxu0 %v1056
    %1573 = vmatprep.subr.bf16.mxu0 %v1061
    %1574 = vmatpush1.bf16.msra.mxu0 %v1060
    %1575 = vmatprep.subr.bf16.mxu0 %v1065
    %1576 = vmatpush1.bf16.msra.mxu0 %v1064
    %1577 = vmatprep.subr.bf16.mxu0 %v1069
    %1578 = vmatpush1.bf16.msra.mxu0 %v1068
    %1579 = vmatprep.subr.bf16.mxu0 %v1073
    %1580 = vmatpush1.bf16.msra.mxu0 %v1072
    %1581 = vmatprep.subr.bf16.mxu0 %v1077
    %1582 = vmatpush1.bf16.msra.mxu0 %v1076
    %1583 = vmatprep.subr.bf16.mxu0 %v1081
    %1584 = vmatpush1.bf16.msra.mxu0 %v1080
    %1585 = vmatprep.subr.bf16.mxu0 %v1085
    %1586 = vmatpush1.bf16.msra.mxu0 %v1084
    %1587 = vmatprep.subr.bf16.mxu0 %v1089
    %1588 = vmatpush1.bf16.msra.mxu0 %v1088
    %1589 = vmatprep.subr.bf16.mxu0 %v1093
    %1590 = vmatpush1.bf16.msra.mxu0 %v1092
    %1591 = vmatprep.subr.bf16.mxu0 %v1097
    %1592 = vmatpush1.bf16.msra.mxu0 %v1096
    %1593 = vmatprep.subr.bf16.mxu0 %v1101
    %1594 = vmatpush1.bf16.msra.mxu0 %v1100
    %1595 = vmatprep.subr.bf16.mxu0 %v1105
    %1596 = vmatpush1.bf16.msra.mxu0 %v1104
    %1597 = vmatprep.mubr.bf16.mxu0 %v324
    %1598 = vmatmul.mubr.bf16.gmra.mrb[0].mxu0 %v323
    %v1599 = vpop.f32.mrb[0].mxu0
    %v1600 = vadd.f32 %v1559, %v1599
    %v1601 = vpop.f32.mrb[0].mxu0
    %v1602 = vadd.f32 %v1561, %v1601
    %v1603 = vpop.f32.mrb[0].mxu0
    %v1604 = vpop.f32.mrb[0].mxu0
    %1605 = vdwg.mxu0
    %1606 = vmatprep.subr.bf16.mxu0 %v1317
    %1607 = vmatpush1.bf16.msra.mxu0 %v1314
    %1608 = vmatprep.subr.bf16.mxu0 0
    %1609 = vmatpush1.bf16.msra.mxu0 0
    %1610 = vmatprep.subr.bf16.mxu0 0
    %1611 = vmatpush1.bf16.msra.mxu0 0
    %1612 = vmatprep.subr.bf16.mxu0 0
    %1613 = vmatpush1.bf16.msra.mxu0 0
    %1614 = vmatprep.subr.bf16.mxu0 0
    %1615 = vmatpush1.bf16.msra.mxu0 0
    %1616 = vmatprep.subr.bf16.mxu0 0
    %1617 = vmatpush1.bf16.msra.mxu0 0
    %1618 = vmatprep.subr.bf16.mxu0 0
    %1619 = vmatpush1.bf16.msra.mxu0 0
    %1620 = vmatprep.subr.bf16.mxu0 0
    %1621 = vmatpush1.bf16.msra.mxu0 0
    %1622 = vmatprep.subr.bf16.mxu0 0
    %1623 = vmatpush1.bf16.msra.mxu0 0
    %1624 = vmatprep.subr.bf16.mxu0 0
    %1625 = vmatpush1.bf16.msra.mxu0 0
    %1626 = vmatprep.subr.bf16.mxu0 0
    %1627 = vmatpush1.bf16.msra.mxu0 0
    %1628 = vmatprep.subr.bf16.mxu0 0
    %1629 = vmatpush1.bf16.msra.mxu0 0
    %1630 = vmatprep.subr.bf16.mxu0 0
    %1631 = vmatpush1.bf16.msra.mxu0 0
    %1632 = vmatprep.subr.bf16.mxu0 0
    %1633 = vmatpush1.bf16.msra.mxu0 0
    %1634 = vmatprep.subr.bf16.mxu0 0
    %1635 = vmatpush1.bf16.msra.mxu0 0
    %1636 = vmatprep.subr.bf16.mxu0 0
    %1637 = vmatpush1.bf16.msra.mxu0 0
    %1638 = vmatprep.mubr.bf16.mxu0 0
    %1639 = vmatmul.mubr.bf16.gmra.mrb[0].mxu0 %v1304
    %v1640 = vpop.f32.mrb[0].mxu0
    %v1641 = vadd.f32 %v1600, %v1640
    %v1642 = vpop.f32.mrb[0].mxu0
    %v1643 = vadd.f32 %v1602, %v1642
    %v1644 = vpop.f32.mrb[0].mxu0
    %v1645 = vpop.f32.mrb[0].mxu0
    %1646 = vdwg.mxu0
    %v1647 = vmax.f32 %v1477, 0.0
    %v1648 = vmax.f32 %v1479, 0.0
    %v1649 = vmax.f32 %v1641, 0.0
    %v1650 = vmax.f32 %v1643, 0.0
    %v1651 = vpack.c.bf16 %v1647, %v1647
    %v1652 = vpack.c.bf16 %v1648, %v1648
    %v1653 = vpack.c.bf16 %v1649, %v1649
    %v1654 = vpack.c.bf16 %v1650, %v1650
    %v1655 = vld [vmem:[#allocation7] sm:$0xff]
    %v1656 = vld [vmem:[#allocation7 + $0x8] sm:$0xff]
    %v1657 = vld [vmem:[#allocation7 + $0x10] sm:$0xff]
    %v1658 = vld [vmem:[#allocation7 + $0x18] sm:$0xff]
    %v1659 = vld [vmem:[#allocation7 + $0x20] sm:$0xff]
    %v1660 = vld [vmem:[#allocation7 + $0x28] sm:$0xff]
    %v1661 = vld [vmem:[#allocation7 + $0x30] sm:$0xff]
    %v1662 = vld [vmem:[#allocation7 + $0x38] sm:$0xff]
    %v1663 = vld [vmem:[#allocation7 + $0x40] sm:$0xff]
    %v1664 = vld [vmem:[#allocation7 + $0x48] sm:$0xff]
    %v1665 = vld [vmem:[#allocation7 + $0x50] sm:$0xff]
    %v1666 = vld [vmem:[#allocation7 + $0x58] sm:$0xff]
    %v1667 = vld [vmem:[#allocation7 + $0x60] sm:$0xff]
    %v1668 = vld [vmem:[#allocation7 + $0x68] sm:$0xff]
    %v1669 = vld [vmem:[#allocation7 + $0x70] sm:$0xff]
    %v1670 = vld [vmem:[#allocation7 + $0x78] sm:$0xff]
    %v1671 = vld [vmem:[#allocation7 + $0x80] sm:$0xff]
    %v1672 = vld [vmem:[#allocation7 + $0x88] sm:$0xff]
    %v1673 = vld [vmem:[#allocation7 + $0x90] sm:$0xff]
    %v1674 = vld [vmem:[#allocation7 + $0x98] sm:$0xff]
    %v1675 = vld [vmem:[#allocation7 + $0xa0] sm:$0xff]
    %v1676 = vld [vmem:[#allocation7 + $0xa8] sm:$0xff]
    %v1677 = vld [vmem:[#allocation7 + $0xb0] sm:$0xff]
    %v1678 = vld [vmem:[#allocation7 + $0xb8] sm:$0xff]
    %v1679 = vld [vmem:[#allocation7 + $0xc0] sm:$0xff]
    %v1680 = vld [vmem:[#allocation7 + $0xc8] sm:$0xff]
    %v1681 = vld [vmem:[#allocation7 + $0xd0] sm:$0xff]
    %v1682 = vld [vmem:[#allocation7 + $0xd8] sm:$0xff]
    %v1683 = vld [vmem:[#allocation7 + $0xe0] sm:$0xff]
    %v1684 = vld [vmem:[#allocation7 + $0xe8] sm:$0xff]
    %v1685 = vld [vmem:[#allocation7 + $0xf0] sm:$0xff]
    %v1686 = vld [vmem:[#allocation7 + $0xf8] sm:$0xff]
    %v1687 = vld [vmem:[#allocation7 + $0x100] sm:$0xff]
    %v1688 = vld [vmem:[#allocation7 + $0x108] sm:$0xff]
    %v1689 = vld [vmem:[#allocation7 + $0x110] sm:$0xff]
    %v1690 = vld [vmem:[#allocation7 + $0x118] sm:$0xff]
    %v1691 = vld [vmem:[#allocation7 + $0x120] sm:$0xff]
    %v1692 = vld [vmem:[#allocation7 + $0x128] sm:$0xff]
    %v1693 = vld [vmem:[#allocation7 + $0x130] sm:$0xff]
    %v1694 = vld [vmem:[#allocation7 + $0x138] sm:$0xff]
    %v1695 = vld [vmem:[#allocation7 + $0x140] sm:$0xff]
    %v1696 = vld [vmem:[#allocation7 + $0x148] sm:$0xff]
    %v1697 = vld [vmem:[#allocation7 + $0x150] sm:$0xff]
    %v1698 = vld [vmem:[#allocation7 + $0x158] sm:$0xff]
    %v1699 = vld [vmem:[#allocation7 + $0x160] sm:$0xff]
    %v1700 = vld [vmem:[#allocation7 + $0x168] sm:$0xff]
    %v1701 = vld [vmem:[#allocation7 + $0x170] sm:$0xff]
    %v1702 = vld [vmem:[#allocation7 + $0x178] sm:$0xff]
    %v1703 = vld [vmem:[#allocation7 + $0x180] sm:$0xff]
    %v1704 = vld [vmem:[#allocation7 + $0x188] sm:$0xff]
    %v1705 = vld [vmem:[#allocation7 + $0x190] sm:$0xff]
    %v1706 = vld [vmem:[#allocation7 + $0x198] sm:$0xff]
    %v1707 = vld [vmem:[#allocation7 + $0x1a0] sm:$0xff]
    %v1708 = vld [vmem:[#allocation7 + $0x1a8] sm:$0xff]
    %v1709 = vld [vmem:[#allocation7 + $0x1b0] sm:$0xff]
    %v1710 = vld [vmem:[#allocation7 + $0x1b8] sm:$0xff]
    %v1711 = vld [vmem:[#allocation7 + $0x1c0] sm:$0xff]
    %v1712 = vld [vmem:[#allocation7 + $0x1c8] sm:$0xff]
    %v1713 = vld [vmem:[#allocation7 + $0x1d0] sm:$0xff]
    %v1714 = vld [vmem:[#allocation7 + $0x1d8] sm:$0xff]
    %v1715 = vld [vmem:[#allocation7 + $0x1e0] sm:$0xff]
    %v1716 = vld [vmem:[#allocation7 + $0x1e8] sm:$0xff]
    %v1717 = vld [vmem:[#allocation7 + $0x1f0] sm:$0xff]
    %v1718 = vld [vmem:[#allocation7 + $0x1f8] sm:$0xff]
    %v1719 = vld [vmem:[%s4] sm:$0x3]
    %v1721 = vlaneseq
    %v1722 = vshrl.u32 %v1721, 7
    %v1723 = vsub.s32 0, %v1722
    %v1724 = vrot.slane %v1719, %v1723
    %v1725 = vlaneseq
    %v1726 = vshrl.u32 %v1725, 7
    %v1727 = vsub.s32 1, %v1726
    %v1728 = vrot.slane %v1719, %v1727
    %v1795 = vunpack.c.l.b16 %v1655
    %v1796 = vunpack.c.h.b16 %v1655
    %v1797 = vunpack.c.l.b16 %v1656
    %v1798 = vunpack.c.h.b16 %v1656
    %v1799 = vunpack.c.l.b16 %v1657
    %v1800 = vunpack.c.h.b16 %v1657
    %v1801 = vunpack.c.l.b16 %v1658
    %v1802 = vunpack.c.h.b16 %v1658
    %v1803 = vunpack.c.l.b16 %v1659
    %v1804 = vunpack.c.h.b16 %v1659
    %v1805 = vunpack.c.l.b16 %v1660
    %v1806 = vunpack.c.h.b16 %v1660
    %v1807 = vunpack.c.l.b16 %v1661
    %v1808 = vunpack.c.h.b16 %v1661
    %v1809 = vunpack.c.l.b16 %v1662
    %v1810 = vunpack.c.h.b16 %v1662
    %v1811 = vunpack.c.l.b16 %v1663
    %v1812 = vunpack.c.h.b16 %v1663
    %v1813 = vunpack.c.l.b16 %v1664
    %v1814 = vunpack.c.h.b16 %v1664
    %v1815 = vunpack.c.l.b16 %v1665
    %v1816 = vunpack.c.h.b16 %v1665
    %v1817 = vunpack.c.l.b16 %v1666
    %v1818 = vunpack.c.h.b16 %v1666
    %v1819 = vunpack.c.l.b16 %v1667
    %v1820 = vunpack.c.h.b16 %v1667
    %v1821 = vunpack.c.l.b16 %v1668
    %v1822 = vunpack.c.h.b16 %v1668
    %v1823 = vunpack.c.l.b16 %v1669
    %v1824 = vunpack.c.h.b16 %v1669
    %v1825 = vunpack.c.l.b16 %v1670
    %v1826 = vunpack.c.h.b16 %v1670
    %v1827 = vunpack.c.l.b16 %v1671
    %v1828 = vunpack.c.h.b16 %v1671
    %v1829 = vunpack.c.l.b16 %v1672
    %v1830 = vunpack.c.h.b16 %v1672
    %v1831 = vunpack.c.l.b16 %v1673
    %v1832 = vunpack.c.h.b16 %v1673
    %v1833 = vunpack.c.l.b16 %v1674
    %v1834 = vunpack.c.h.b16 %v1674
    %v1835 = vunpack.c.l.b16 %v1675
    %v1836 = vunpack.c.h.b16 %v1675
    %v1837 = vunpack.c.l.b16 %v1676
    %v1838 = vunpack.c.h.b16 %v1676
    %v1839 = vunpack.c.l.b16 %v1677
    %v1840 = vunpack.c.h.b16 %v1677
    %v1841 = vunpack.c.l.b16 %v1678
    %v1842 = vunpack.c.h.b16 %v1678
    %v1843 = vunpack.c.l.b16 %v1679
    %v1844 = vunpack.c.h.b16 %v1679
    %v1845 = vunpack.c.l.b16 %v1680
    %v1846 = vunpack.c.h.b16 %v1680
    %v1847 = vunpack.c.l.b16 %v1681
    %v1848 = vunpack.c.h.b16 %v1681
    %v1849 = vunpack.c.l.b16 %v1682
    %v1850 = vunpack.c.h.b16 %v1682
    %v1851 = vunpack.c.l.b16 %v1683
    %v1852 = vunpack.c.h.b16 %v1683
    %v1853 = vunpack.c.l.b16 %v1684
    %v1854 = vunpack.c.h.b16 %v1684
    %v1855 = vunpack.c.l.b16 %v1685
    %v1856 = vunpack.c.h.b16 %v1685
    %v1857 = vunpack.c.l.b16 %v1686
    %v1858 = vunpack.c.h.b16 %v1686
    %v1859 = vunpack.c.l.b16 %v1687
    %v1860 = vunpack.c.h.b16 %v1687
    %v1861 = vunpack.c.l.b16 %v1688
    %v1862 = vunpack.c.h.b16 %v1688
    %v1863 = vunpack.c.l.b16 %v1689
    %v1864 = vunpack.c.h.b16 %v1689
    %v1865 = vunpack.c.l.b16 %v1690
    %v1866 = vunpack.c.h.b16 %v1690
    %v1867 = vunpack.c.l.b16 %v1691
    %v1868 = vunpack.c.h.b16 %v1691
    %v1869 = vunpack.c.l.b16 %v1692
    %v1870 = vunpack.c.h.b16 %v1692
    %v1871 = vunpack.c.l.b16 %v1693
    %v1872 = vunpack.c.h.b16 %v1693
    %v1873 = vunpack.c.l.b16 %v1694
    %v1874 = vunpack.c.h.b16 %v1694
    %v1875 = vunpack.c.l.b16 %v1695
    %v1876 = vunpack.c.h.b16 %v1695
    %v1877 = vunpack.c.l.b16 %v1696
    %v1878 = vunpack.c.h.b16 %v1696
    %v1879 = vunpack.c.l.b16 %v1697
    %v1880 = vunpack.c.h.b16 %v1697
    %v1881 = vunpack.c.l.b16 %v1698
    %v1882 = vunpack.c.h.b16 %v1698
    %v1883 = vunpack.c.l.b16 %v1699
    %v1884 = vunpack.c.h.b16 %v1699
    %v1885 = vunpack.c.l.b16 %v1700
    %v1886 = vunpack.c.h.b16 %v1700
    %v1887 = vunpack.c.l.b16 %v1701
    %v1888 = vunpack.c.h.b16 %v1701
    %v1889 = vunpack.c.l.b16 %v1702
    %v1890 = vunpack.c.h.b16 %v1702
    %v1891 = vunpack.c.l.b16 %v1703
    %v1892 = vunpack.c.h.b16 %v1703
    %v1893 = vunpack.c.l.b16 %v1704
    %v1894 = vunpack.c.h.b16 %v1704
    %v1895 = vunpack.c.l.b16 %v1705
    %v1896 = vunpack.c.h.b16 %v1705
    %v1897 = vunpack.c.l.b16 %v1706
    %v1898 = vunpack.c.h.b16 %v1706
    %v1899 = vunpack.c.l.b16 %v1707
    %v1900 = vunpack.c.h.b16 %v1707
    %v1901 = vunpack.c.l.b16 %v1708
    %v1902 = vunpack.c.h.b16 %v1708
    %v1903 = vunpack.c.l.b16 %v1709
    %v1904 = vunpack.c.h.b16 %v1709
    %v1905 = vunpack.c.l.b16 %v1710
    %v1906 = vunpack.c.h.b16 %v1710
    %v1907 = vunpack.c.l.b16 %v1711
    %v1908 = vunpack.c.h.b16 %v1711
    %v1909 = vunpack.c.l.b16 %v1712
    %v1910 = vunpack.c.h.b16 %v1712
    %v1911 = vunpack.c.l.b16 %v1713
    %v1912 = vunpack.c.h.b16 %v1713
    %v1913 = vunpack.c.l.b16 %v1714
    %v1914 = vunpack.c.h.b16 %v1714
    %v1915 = vunpack.c.l.b16 %v1715
    %v1916 = vunpack.c.h.b16 %v1715
    %v1917 = vunpack.c.l.b16 %v1716
    %v1918 = vunpack.c.h.b16 %v1716
    %v1919 = vunpack.c.l.b16 %v1717
    %v1920 = vunpack.c.h.b16 %v1717
    %v1921 = vunpack.c.l.b16 %v1718
    %v1922 = vunpack.c.h.b16 %v1718
    %v1923 = vpack.c.b16 %v1797, %v1795
    %v1924 = vpack.c.b16 %v1798, %v1796
    %v1925 = vpack.c.b16 %v1801, %v1799
    %v1926 = vpack.c.b16 %v1802, %v1800
    %v1927 = vpack.c.b16 %v1805, %v1803
    %v1928 = vpack.c.b16 %v1806, %v1804
    %v1929 = vpack.c.b16 %v1809, %v1807
    %v1930 = vpack.c.b16 %v1810, %v1808
    %v1931 = vpack.c.b16 %v1813, %v1811
    %v1932 = vpack.c.b16 %v1814, %v1812
    %v1933 = vpack.c.b16 %v1817, %v1815
    %v1934 = vpack.c.b16 %v1818, %v1816
    %v1935 = vpack.c.b16 %v1821, %v1819
    %v1936 = vpack.c.b16 %v1822, %v1820
    %v1937 = vpack.c.b16 %v1825, %v1823
    %v1938 = vpack.c.b16 %v1826, %v1824
    %v1939 = vpack.c.b16 %v1829, %v1827
    %v1940 = vpack.c.b16 %v1830, %v1828
    %v1941 = vpack.c.b16 %v1833, %v1831
    %v1942 = vpack.c.b16 %v1834, %v1832
    %v1943 = vpack.c.b16 %v1837, %v1835
    %v1944 = vpack.c.b16 %v1838, %v1836
    %v1945 = vpack.c.b16 %v1841, %v1839
    %v1946 = vpack.c.b16 %v1842, %v1840
    %v1947 = vpack.c.b16 %v1845, %v1843
    %v1948 = vpack.c.b16 %v1846, %v1844
    %v1949 = vpack.c.b16 %v1849, %v1847
    %v1950 = vpack.c.b16 %v1850, %v1848
    %v1951 = vpack.c.b16 %v1853, %v1851
    %v1952 = vpack.c.b16 %v1854, %v1852
    %v1953 = vpack.c.b16 %v1857, %v1855
    %v1954 = vpack.c.b16 %v1858, %v1856
    %v1955 = vpack.c.b16 %v1861, %v1859
    %v1956 = vpack.c.b16 %v1862, %v1860
    %v1957 = vpack.c.b16 %v1865, %v1863
    %v1958 = vpack.c.b16 %v1866, %v1864
    %v1959 = vpack.c.b16 %v1869, %v1867
    %v1960 = vpack.c.b16 %v1870, %v1868
    %v1961 = vpack.c.b16 %v1873, %v1871
    %v1962 = vpack.c.b16 %v1874, %v1872
    %v1963 = vpack.c.b16 %v1877, %v1875
    %v1964 = vpack.c.b16 %v1878, %v1876
    %v1965 = vpack.c.b16 %v1881, %v1879
    %v1966 = vpack.c.b16 %v1882, %v1880
    %v1967 = vpack.c.b16 %v1885, %v1883
    %v1968 = vpack.c.b16 %v1886, %v1884
    %v1969 = vpack.c.b16 %v1889, %v1887
    %v1970 = vpack.c.b16 %v1890, %v1888
    %v1971 = vpack.c.b16 %v1893, %v1891
    %v1972 = vpack.c.b16 %v1894, %v1892
    %v1973 = vpack.c.b16 %v1897, %v1895
    %v1974 = vpack.c.b16 %v1898, %v1896
    %v1975 = vpack.c.b16 %v1901, %v1899
    %v1976 = vpack.c.b16 %v1902, %v1900
    %v1977 = vpack.c.b16 %v1905, %v1903
    %v1978 = vpack.c.b16 %v1906, %v1904
    %v1979 = vpack.c.b16 %v1909, %v1907
    %v1980 = vpack.c.b16 %v1910, %v1908
    %v1981 = vpack.c.b16 %v1913, %v1911
    %v1982 = vpack.c.b16 %v1914, %v1912
    %v1983 = vpack.c.b16 %v1917, %v1915
    %v1984 = vpack.c.b16 %v1918, %v1916
    %v1985 = vpack.c.b16 %v1921, %v1919
    %v1986 = vpack.c.b16 %v1922, %v1920
    %2051 = vmatprep.subr.bf16.mxu0 %v1924
    %2052 = vmatpush1.bf16.msra.mxu0 %v1923
    %2053 = vmatprep.subr.bf16.mxu0 %v1926
    %2054 = vmatpush1.bf16.msra.mxu0 %v1925
    %2055 = vmatprep.subr.bf16.mxu0 %v1928
    %2056 = vmatpush1.bf16.msra.mxu0 %v1927
    %2057 = vmatprep.subr.bf16.mxu0 %v1930
    %2058 = vmatpush1.bf16.msra.mxu0 %v1929
    %2059 = vmatprep.subr.bf16.mxu0 %v1932
    %2060 = vmatpush1.bf16.msra.mxu0 %v1931
    %2061 = vmatprep.subr.bf16.mxu0 %v1934
    %2062 = vmatpush1.bf16.msra.mxu0 %v1933
    %2063 = vmatprep.subr.bf16.mxu0 %v1936
    %2064 = vmatpush1.bf16.msra.mxu0 %v1935
    %2065 = vmatprep.subr.bf16.mxu0 %v1938
    %2066 = vmatpush1.bf16.msra.mxu0 %v1937
    %2067 = vmatprep.subr.bf16.mxu0 %v1940
    %2068 = vmatpush1.bf16.msra.mxu0 %v1939
    %2069 = vmatprep.subr.bf16.mxu0 %v1942
    %2070 = vmatpush1.bf16.msra.mxu0 %v1941
    %2071 = vmatprep.subr.bf16.mxu0 %v1944
    %2072 = vmatpush1.bf16.msra.mxu0 %v1943
    %2073 = vmatprep.subr.bf16.mxu0 %v1946
    %2074 = vmatpush1.bf16.msra.mxu0 %v1945
    %2075 = vmatprep.subr.bf16.mxu0 %v1948
    %2076 = vmatpush1.bf16.msra.mxu0 %v1947
    %2077 = vmatprep.subr.bf16.mxu0 %v1950
    %2078 = vmatpush1.bf16.msra.mxu0 %v1949
    %2079 = vmatprep.subr.bf16.mxu0 %v1952
    %2080 = vmatpush1.bf16.msra.mxu0 %v1951
    %2081 = vmatprep.subr.bf16.mxu0 %v1954
    %2082 = vmatpush1.bf16.msra.mxu0 %v1953
    %2083 = vmatprep.mubr.bf16.mxu0 %v1652
    %2084 = vmatmul.mubr.bf16.gmra.mrb[0].mxu0 %v1651
    %v2085 = vpop.f32.mrb[0].mxu0
    %v2086 = vadd.f32 %v1724, %v2085
    %v2087 = vpop.f32.mrb[0].mxu0
    %v2088 = vadd.f32 %v1728, %v2087
    %v2089 = vpop.f32.mrb[0].mxu0
    %v2090 = vpop.f32.mrb[0].mxu0
    %2091 = vdwg.mxu0
    %2092 = vmatprep.subr.bf16.mxu0 %v1956
    %2093 = vmatpush1.bf16.msra.mxu0 %v1955
    %2094 = vmatprep.subr.bf16.mxu0 %v1958
    %2095 = vmatpush1.bf16.msra.mxu0 %v1957
    %2096 = vmatprep.subr.bf16.mxu0 %v1960
    %2097 = vmatpush1.bf16.msra.mxu0 %v1959
    %2098 = vmatprep.subr.bf16.mxu0 %v1962
    %2099 = vmatpush1.bf16.msra.mxu0 %v1961
    %2100 = vmatprep.subr.bf16.mxu0 %v1964
    %2101 = vmatpush1.bf16.msra.mxu0 %v1963
    %2102 = vmatprep.subr.bf16.mxu0 %v1966
    %2103 = vmatpush1.bf16.msra.mxu0 %v1965
    %2104 = vmatprep.subr.bf16.mxu0 %v1968
    %2105 = vmatpush1.bf16.msra.mxu0 %v1967
    %2106 = vmatprep.subr.bf16.mxu0 %v1970
    %2107 = vmatpush1.bf16.msra.mxu0 %v1969
    %2108 = vmatprep.subr.bf16.mxu0 %v1972
    %2109 = vmatpush1.bf16.msra.mxu0 %v1971
    %2110 = vmatprep.subr.bf16.mxu0 %v1974
    %2111 = vmatpush1.bf16.msra.mxu0 %v1973
    %2112 = vmatprep.subr.bf16.mxu0 %v1976
    %2113 = vmatpush1.bf16.msra.mxu0 %v1975
    %2114 = vmatprep.subr.bf16.mxu0 %v1978
    %2115 = vmatpush1.bf16.msra.mxu0 %v1977
    %2116 = vmatprep.subr.bf16.mxu0 %v1980
    %2117 = vmatpush1.bf16.msra.mxu0 %v1979
    %2118 = vmatprep.subr.bf16.mxu0 %v1982
    %2119 = vmatpush1.bf16.msra.mxu0 %v1981
    %2120 = vmatprep.subr.bf16.mxu0 %v1984
    %2121 = vmatpush1.bf16.msra.mxu0 %v1983
    %2122 = vmatprep.subr.bf16.mxu0 %v1986
    %2123 = vmatpush1.bf16.msra.mxu0 %v1985
    %2124 = vmatprep.mubr.bf16.mxu0 %v1654
    %2125 = vmatmul.mubr.bf16.gmra.mrb[0].mxu0 %v1653
    %v2126 = vpop.f32.mrb[0].mxu0
    %v2127 = vadd.f32 %v2086, %v2126
    %v2128 = vpop.f32.mrb[0].mxu0
    %v2129 = vadd.f32 %v2088, %v2128
    %v2130 = vpop.f32.mrb[0].mxu0
    %v2131 = vpop.f32.mrb[0].mxu0
    %2132 = vdwg.mxu0
    %v2133 = vmax.f32 %v2127, 0.0
    %v2134 = vmax.f32 %v2129, 0.0
    %v2135 = vpack.c.bf16 %v2133, %v2133
    %v2136 = vpack.c.bf16 %v2134, %v2134
    %v2137 = vld [vmem:[#allocation8] sm:$0xf]
    %v2138 = vld [vmem:[#allocation8 + $0x4] sm:$0xf]
    %v2139 = vld [vmem:[#allocation8 + $0x8] sm:$0xf]
    %v2140 = vld [vmem:[#allocation8 + $0xc] sm:$0xf]
    %v2141 = vld [vmem:[#allocation8 + $0x10] sm:$0xf]
    %v2142 = vld [vmem:[#allocation8 + $0x14] sm:$0xf]
    %v2143 = vld [vmem:[#allocation8 + $0x18] sm:$0xf]
    %v2144 = vld [vmem:[#allocation8 + $0x1c] sm:$0xf]
    %v2145 = vld [vmem:[#allocation8 + $0x20] sm:$0xf]
    %v2146 = vld [vmem:[#allocation8 + $0x24] sm:$0xf]
    %v2147 = vld [vmem:[#allocation8 + $0x28] sm:$0xf]
    %v2148 = vld [vmem:[#allocation8 + $0x2c] sm:$0xf]
    %v2149 = vld [vmem:[#allocation8 + $0x30] sm:$0xf]
    %v2150 = vld [vmem:[#allocation8 + $0x34] sm:$0xf]
    %v2151 = vld [vmem:[#allocation8 + $0x38] sm:$0xf]
    %v2152 = vld [vmem:[#allocation8 + $0x3c] sm:$0xf]
    %v2153 = vld [vmem:[#allocation8 + $0x40] sm:$0xf]
    %v2154 = vld [vmem:[#allocation8 + $0x44] sm:$0xf]
    %v2155 = vld [vmem:[#allocation8 + $0x48] sm:$0xf]
    %v2156 = vld [vmem:[#allocation8 + $0x4c] sm:$0xf]
    %v2157 = vld [vmem:[#allocation8 + $0x50] sm:$0xf]
    %v2158 = vld [vmem:[#allocation8 + $0x54] sm:$0xf]
    %v2159 = vld [vmem:[#allocation8 + $0x58] sm:$0xf]
    %v2160 = vld [vmem:[#allocation8 + $0x5c] sm:$0xf]
    %v2161 = vld [vmem:[#allocation8 + $0x60] sm:$0xf]
    %v2162 = vld [vmem:[#allocation8 + $0x64] sm:$0xf]
    %v2163 = vld [vmem:[#allocation8 + $0x68] sm:$0xf]
    %v2164 = vld [vmem:[#allocation8 + $0x6c] sm:$0xf]
    %v2165 = vld [vmem:[#allocation8 + $0x70] sm:$0xf]
    %v2166 = vld [vmem:[#allocation8 + $0x74] sm:$0xf]
    %v2167 = vld [vmem:[#allocation8 + $0x78] sm:$0xf]
    %v2168 = vld [vmem:[#allocation8 + $0x7c] sm:$0xf]
    %v2169 = vld [vmem:[%s6] sm:$0x1]
    %v2171 = vlaneseq
    %v2172 = vshrl.u32 %v2171, 7
    %v2173 = vsub.s32 0, %v2172
    %v2174 = vrot.slane %v2169, %v2173
    %v2208 = vunpack.c.l.b16 %v2137
    %v2209 = vunpack.c.l.b16 %v2138
    %v2210 = vunpack.c.l.b16 %v2139
    %v2211 = vunpack.c.l.b16 %v2140
    %v2212 = vunpack.c.l.b16 %v2141
    %v2213 = vunpack.c.l.b16 %v2142
    %v2214 = vunpack.c.l.b16 %v2143
    %v2215 = vunpack.c.l.b16 %v2144
    %v2216 = vunpack.c.l.b16 %v2145
    %v2217 = vunpack.c.l.b16 %v2146
    %v2218 = vunpack.c.l.b16 %v2147
    %v2219 = vunpack.c.l.b16 %v2148
    %v2220 = vunpack.c.l.b16 %v2149
    %v2221 = vunpack.c.l.b16 %v2150
    %v2222 = vunpack.c.l.b16 %v2151
    %v2223 = vunpack.c.l.b16 %v2152
    %v2224 = vunpack.c.l.b16 %v2153
    %v2225 = vunpack.c.l.b16 %v2154
    %v2226 = vunpack.c.l.b16 %v2155
    %v2227 = vunpack.c.l.b16 %v2156
    %v2228 = vunpack.c.l.b16 %v2157
    %v2229 = vunpack.c.l.b16 %v2158
    %v2230 = vunpack.c.l.b16 %v2159
    %v2231 = vunpack.c.l.b16 %v2160
    %v2232 = vunpack.c.l.b16 %v2161
    %v2233 = vunpack.c.l.b16 %v2162
    %v2234 = vunpack.c.l.b16 %v2163
    %v2235 = vunpack.c.l.b16 %v2164
    %v2236 = vunpack.c.l.b16 %v2165
    %v2237 = vunpack.c.l.b16 %v2166
    %v2238 = vunpack.c.l.b16 %v2167
    %v2239 = vunpack.c.l.b16 %v2168
    %v2240 = vpack.c.b16 %v2209, %v2208
    %v2241 = vpack.c.b16 %v2211, %v2210
    %v2242 = vpack.c.b16 %v2213, %v2212
    %v2243 = vpack.c.b16 %v2215, %v2214
    %v2244 = vpack.c.b16 %v2217, %v2216
    %v2245 = vpack.c.b16 %v2219, %v2218
    %v2246 = vpack.c.b16 %v2221, %v2220
    %v2247 = vpack.c.b16 %v2223, %v2222
    %v2248 = vpack.c.b16 %v2225, %v2224
    %v2249 = vpack.c.b16 %v2227, %v2226
    %v2250 = vpack.c.b16 %v2229, %v2228
    %v2251 = vpack.c.b16 %v2231, %v2230
    %v2252 = vpack.c.b16 %v2233, %v2232
    %v2253 = vpack.c.b16 %v2235, %v2234
    %v2254 = vpack.c.b16 %v2237, %v2236
    %v2255 = vpack.c.b16 %v2239, %v2238
    %2272 = vmatprep.subr.bf16.mxu0 0
    %2273 = vmatpush1.bf16.msra.mxu0 %v2240
    %2274 = vmatprep.subr.bf16.mxu0 0
    %2275 = vmatpush1.bf16.msra.mxu0 %v2241
    %2276 = vmatprep.subr.bf16.mxu0 0
    %2277 = vmatpush1.bf16.msra.mxu0 %v2242
    %2278 = vmatprep.subr.bf16.mxu0 0
    %2279 = vmatpush1.bf16.msra.mxu0 %v2243
    %2280 = vmatprep.subr.bf16.mxu0 0
    %2281 = vmatpush1.bf16.msra.mxu0 %v2244
    %2282 = vmatprep.subr.bf16.mxu0 0
    %2283 = vmatpush1.bf16.msra.mxu0 %v2245
    %2284 = vmatprep.subr.bf16.mxu0 0
    %2285 = vmatpush1.bf16.msra.mxu0 %v2246
    %2286 = vmatprep.subr.bf16.mxu0 0
    %2287 = vmatpush1.bf16.msra.mxu0 %v2247
    %2288 = vmatprep.subr.bf16.mxu0 0
    %2289 = vmatpush1.bf16.msra.mxu0 %v2248
    %2290 = vmatprep.subr.bf16.mxu0 0
    %2291 = vmatpush1.bf16.msra.mxu0 %v2249
    %2292 = vmatprep.subr.bf16.mxu0 0
    %2293 = vmatpush1.bf16.msra.mxu0 %v2250
    %2294 = vmatprep.subr.bf16.mxu0 0
    %2295 = vmatpush1.bf16.msra.mxu0 %v2251
    %2296 = vmatprep.subr.bf16.mxu0 0
    %2297 = vmatpush1.bf16.msra.mxu0 %v2252
    %2298 = vmatprep.subr.bf16.mxu0 0
    %2299 = vmatpush1.bf16.msra.mxu0 %v2253
    %2300 = vmatprep.subr.bf16.mxu0 0
    %2301 = vmatpush1.bf16.msra.mxu0 %v2254
    %2302 = vmatprep.subr.bf16.mxu0 0
    %2303 = vmatpush1.bf16.msra.mxu0 %v2255
    %2304 = vmatprep.mubr.bf16.mxu0 %v2136
    %2305 = vmatmul.mubr.bf16.gmra.mrb[0].mxu0 %v2135
    %v2306 = vpop.f32.mrb[0].mxu0
    %v2307 = vadd.f32 %v2174, %v2306
    %v2308 = vpop.f32.mrb[0].mxu0
    %v2309 = vpop.f32.mrb[0].mxu0
    %v2310 = vpop.f32.mrb[0].mxu0
    %2311 = vdwg.mxu0
    %v2312 = vmax.f32 %v2307, 0.0
    %v2313 = vld [vmem:[%s7] sm:$0x1]
    %v2315 = vlaneseq
    %v2316 = vshrl.u32 %v2315, 7
    %v2317 = vsub.s32 0, %v2316
    %v2318 = vrot.slane %v2313, %v2317
    %v2320 = vmul.f32 %v2312, %v2318
    %2321 = vadd.xlane.f32.xlu0 %v2320
    %v2322 = vpop.xlane.xlu0 %2321
    %v2323 = vld [vmem:[#allocation2] sm:$0x1]
    %v2325 = vlaneseq
    %v2326 = vshrl.u32 %v2325, 7
    %v2327 = vsub.s32 0, %v2326
    %v2328 = vrot.slane %v2323, %v2327
    %v2330 = vadd.f32 %v2322, %v2328
    %v2331 = vsub.f32 0.0, %v2330
    %v2332 = vmul.f32 %v2331, 1.442695
    %v2333 = vpow.pop %v2332
    %v2334 = vadd.f32 %v2333, 1.0
    %v2335 = vrcp.pop %v2334
    %vm2336 = vcmask 7168
    %2337 = vst.msk [vmem:[%s9] sm:$0xff] %vm2336, %v2335
    // Predicated region
    $region54: #{tpu_custom_call.1} parent=1 // pred_check
      _
    $region55: #{tpu_custom_call.1} parent=1 // pred_check_branch
      %2339 = sbr.rel (0) target = $region57
    $region56: #{tpu_custom_call.1} parent=1 // pred_region
      _
    $region57: #{tpu_custom_call.1} parent=1 // pred_fallthru
      _
    // Predicated region
    $region58: #{tpu_custom_call.1} parent=1 // pred_check
      _
    $region59: #{tpu_custom_call.1} parent=1 // pred_check_branch
      %2341 = sbr.rel (0) target = $region61
    $region60: #{tpu_custom_call.1} parent=1 // pred_region
      _
    $region61: #{tpu_custom_call.1} parent=1 // pred_fallthru
      _
    %2342 = vsyncpa [#allocation4], 1
    %2343 = vsyncpa [#allocation6], 1
    %2344 = vsyncpa [#allocation9], 1

</llo_original>
